<compile_context>
chip_gen: v6e
topology: v6e:2x2x1
jax: 0.10.0
libtpu: 0.0.40
codegen_flags: <defaults>
</compile_context>

<pallas_src>
import math

import jax
import jax.numpy as jnp
from jax.experimental import pallas as pl
from jax.experimental.pallas import tpu as pltpu

# -------- module hyper-parameters (small synthetic sizes; PyTorch default dim=512) -----
DIM = 64                     # model dim
HEADS = 8
DIM_HEAD = DIM // 8          # 8
NUM_LANDMARKS = DIM // 2     # 32
PINV_ITERS = 6
RES_KERNEL = 33
LN_EPS = 1e-5
SCALE = DIM_HEAD ** -0.5

HD = HEADS * DIM_HEAD        # 64  (head-concatenated inner dim)
HM = HEADS * NUM_LANDMARKS   # 256 (head-packed landmark dim)
PINV_TILE = 128              # 4 heads (4 * 32) per Moore-Penrose tile


# ----------------------------- pass 1: landmark / stats kernel -------------------------
def _make_landmark_kernel(N, pad_len):
    H, M = HEADS, NUM_LANDMARKS
    f32 = jnp.float32

    def kernel(x_ref, lnw_ref, lnb_ref, wqk_ref, pool_ref, md_ref, negm_ref,
               ln_ref, qlbd_ref, klbd_ref, a2bd_ref, stats_ref):
        lnw = lnw_ref[...]                       # (1, C)
        lnb = lnb_ref[...]                       # (1, C)
        pool = pool_ref[...]                     # (M, N) f32
        wqk = wqk_ref[...]                       # (C, 2*HD) f32 (pinv-sensitive path)
        md = md_ref[...]                         # (HM, HD) block mask
        negm = negm_ref[...]                     # (HM, HM): 0 on-block, -1e30 off-block

        # ---- LayerNorm (f32) + front-pad masking (padded rows must be exactly 0) ----
        x = x_ref[0]                             # (N, C)
        seq = jax.lax.broadcasted_iota(jnp.int32, (N, 1), 0)
        mu = jnp.mean(x, axis=-1, keepdims=True)
        var = jnp.mean((x - mu) ** 2, axis=-1, keepdims=True)
        ln = (x - mu) * jax.lax.rsqrt(var + LN_EPS) * lnw + lnb
        ln = jnp.where(seq >= pad_len, ln, 0.0)
        ln_ref[0] = ln

        # ---- landmark pooling + landmark q/k projection (f32) ----
        lp = jnp.dot(pool, ln, preferred_element_type=f32)           # (M, C)
        qk_l = jnp.dot(lp, wqk, preferred_element_type=f32)          # (M, 2*HD)
        q_l = qk_l[:, :HD] * SCALE
        k_l = qk_l[:, HD:]

        # block-diagonal packed operands: row-block h keeps only head h's D columns
        q_l_bd = jnp.concatenate([q_l] * H, axis=0) * md             # (HM, HD)
        k_l_bd = jnp.concatenate([k_l] * H, axis=0) * md             # (HM, HD)
        qlbd_ref[0] = q_l_bd
        klbd_ref[0] = k_l_bd

        # ---- attn2 for ALL heads in one matmul; off-block logits -> -1e30 so the full
        #      row softmax equals the per-head softmax (exact divide: pinv-sensitive) ----
        s2 = jax.lax.dot_general(q_l_bd, k_l_bd, (((1,), (1,)), ((), ())),
                                 preferred_element_type=f32) + negm  # (HM, HM)
        s2 = s2 - jnp.max(s2, axis=-1, keepdims=True)
        e2 = jnp.exp(s2)                                             # exactly 0 off-block
        a2 = e2 / jnp.sum(e2, axis=-1, keepdims=True)
        a2bd_ref[0] = a2

        # per-batch max row-sum / col-sum of attn2 (softmax output => abs() is a no-op)
        rmax = jnp.max(jnp.sum(a2, axis=-1, keepdims=True), keepdims=True)   # (1, 1)
        cmax = jnp.max(jnp.sum(a2, axis=-2, keepdims=True), keepdims=True)   # (1, 1)
        stats_ref[0] = jnp.concatenate([rmax, cmax], axis=-1)        # (1, 2)

    return kernel


# ----------------------------- pass 2: main attention kernel ---------------------------
def _make_main_kernel(N):
    f32, bf16 = jnp.float32, jnp.bfloat16
    G = PINV_TILE
    NG = HM // G
    assert HM % G == 0
    cpad = RES_KERNEL // 2
    PADN = ((N + 2 * cpad + 7) // 8) * 8

    def _dot(a, b):
        return jnp.dot(a, b, preferred_element_type=f32)

    def _dot_nt(a, b):          # a @ b.T (contract last dims, no explicit transpose)
        return jax.lax.dot_general(a, b, (((1,), (1,)), ((), ())),
                                   preferred_element_type=f32)

    def _bdot_bf16(a, b):       # batched (NG,G,K)@(NG,K,G): bf16 MXU operands, f32 acc
        return jax.lax.dot_general(a.astype(bf16), b.astype(bf16),
                                   (((2,), (1,)), ((0,), (0,))),
                                   preferred_element_type=f32)

    def kernel(x_ref, ln_ref, wqkv_ref, wo_ref, bo_ref, conv_ref,
               qlbd_ref, klbd_ref, a2bd_ref, blk_ref, md_ref, eye_ref, inv_ref,
               o_ref, vpad_ref):
        x = x_ref[0]                             # (N, C) original (residual input)
        ln = ln_ref[0]                           # (N, C) masked LayerNorm from pass 1
        bo = bo_ref[...]                         # (1, C)
        blk = blk_ref[...]                       # (HM, HM) block-diagonal ones
        md = md_ref[...]                         # (HM, HD)
        eye = eye_ref[...]                       # (G, G)
        inv_init = inv_ref[0, 0]                 # SMEM scalar: 1/(max col * max row)

        # ---- fused token QKV projection: pre-cast bf16 weights, f32 accumulate ----
        qkv = _dot(ln.astype(bf16), wqkv_ref[...])                   # (N, 3*HD)
        q = qkv[:, :HD] * SCALE
        k = qkv[:, HD:2 * HD]
        v = qkv[:, 2 * HD:]

        q_l_bd = qlbd_ref[0]                     # (HM, HD) block-masked (from pass 1)
        k_l_bd = klbd_ref[0]                     # (HM, HD)
        a2_bd = a2bd_ref[0]                      # (HM, HM) block-diagonal softmax

        # ---- attn1: packed (N, HM) scores, segmented (per-head) softmax.
        # Row-max shift + per-block denominators from one e @ blk matmul.  Assumes the
        # per-row inter-head logit gap stays < ~80 (true at this scale); a tiny floor
        # guards against NaN in the pathological all-underflow case.
        s1 = _dot_nt(q, k_l_bd)                                      # (N, HM)
        e1 = jnp.exp(s1 - jnp.max(s1, axis=-1, keepdims=True))
        den1 = jnp.maximum(_dot(e1, blk), 1e-30)                     # per-block sums
        a1 = e1 * pl.reciprocal(den1, approx=True)

        # ---- attn3: packed (HM, N) scores, plain row softmax; attn3 @ v fused ----
        s3 = _dot_nt(q_l_bd, k)                                      # (HM, N)
        e3 = jnp.exp(s3 - jnp.max(s3, axis=-1, keepdims=True))
        a3 = e3 * pl.reciprocal(jnp.sum(e3, axis=-1, keepdims=True), approx=True)
        a3v = _dot(a3, v) * md                                       # (HM, HD) block-diag

        # ---- Moore-Penrose iteration: NG groups of 4 heads on 128x128 tiles,
        #      batched dot_general, bf16 operands / f32 accumulate ----
        a2g = jnp.stack([a2_bd[g * G:(g + 1) * G, g * G:(g + 1) * G]
                         for g in range(NG)])                        # (NG, G, G)
        a2t = a2_bd.T
        z = jnp.stack([a2t[g * G:(g + 1) * G, g * G:(g + 1) * G]
                       for g in range(NG)]) * inv_init               # (NG, G, G)
        for _ in range(PINV_ITERS):
            xz = _bdot_bf16(a2g, z)
            t1 = 7.0 * eye - xz
            t2 = 15.0 * eye - _bdot_bf16(xz, t1)
            t3 = 13.0 * eye - _bdot_bf16(xz, t2)
            z = 0.25 * _bdot_bf16(z, t3)

        a3vg = jnp.stack([a3v[g * G:(g + 1) * G, :] for g in range(NG)])   # (NG, G, HD)
        zavg = jax.lax.dot_general(z, a3vg, (((2,), (1,)), ((0,), (0,))),
                                   preferred_element_type=f32)             # (NG, G, HD)
        zav = jnp.concatenate([zavg[g] for g in range(NG)], axis=0)        # (HM, HD)

        # ---- epilogue: all heads in one (N, HM)@(HM, HD) matmul ----
        out = _dot(a1, zav)                                                # (N, HD)

        # ---- depthwise residual conv (kernel 33, groups=heads) via padded scratch ----
        vpad_ref[...] = jnp.zeros_like(vpad_ref)
        vpad_ref[pl.ds(cpad, N), :] = v
        res = jnp.zeros((N, HD), f32)
        for kk in range(RES_KERNEL):
            res = res + vpad_ref[pl.ds(kk, N), :] * conv_ref[pl.ds(kk, 1), :]
        out = out + res

        # ---- fused output projection (bf16 weights) + bias + outer residual ----
        proj = _dot(out.astype(bf16), wo_ref[...])                         # (N, C)
        o_ref[0] = x + proj + bo

    return kernel, PADN


# ----------------------------- spec helpers ---------------------------------------------
def _const_spec(shape):
    nd = len(shape)
    return pl.BlockSpec(shape, lambda bb, _nd=nd: (0,) * _nd)


def _batch_spec(shape):
    nd = len(shape)
    return pl.BlockSpec((1,) + tuple(shape[1:]),
                        lambda bb, _nd=nd: (bb,) + (0,) * (_nd - 1))


# ----------------------------- wrapper (glue) -------------------------------------------
def _pool_matrix(n, N):
    """(M, N) landmark mean-pooling matrix with divisor l = ceil(n / M)."""
    l = math.ceil(n / NUM_LANDMARKS)
    return (((jnp.arange(N)[None, :] // l) == jnp.arange(NUM_LANDMARKS)[:, None])
            .astype(jnp.float32) / l)


def _conv_band_matrix(conv_w, N):
    """(H, 33) depthwise conv weights -> (H, N, N) banded matrices (reference only)."""
    cpad = RES_KERNEL // 2
    i = jnp.arange(N)[:, None]
    j = jnp.arange(N)[None, :]
    kidx = j - i + cpad
    ok = (kidx >= 0) & (kidx < RES_KERNEL)
    kidx_c = jnp.clip(kidx, 0, RES_KERNEL - 1)
    return jnp.where(ok[None, :, :], conv_w[:, kidx_c], 0.0).astype(jnp.float32)


def trans_layer_pallas(x, params):
    b, n, c = x.shape
    assert c == DIM
    f32, bf16 = jnp.float32, jnp.bfloat16
    pad = (NUM_LANDMARKS - n % NUM_LANDMARKS) % NUM_LANDMARKS
    N = n + pad
    x_pad = jnp.pad(x, ((0, 0), (pad, 0), (0, 0))).astype(f32)       # pad at FRONT

    # ---- wrapper-side constant / weight packing (hoisted out of the kernels) ----
    pool = _pool_matrix(n, N)                                        # (M, N)
    conv_lane = jnp.repeat(params["conv_w"].T, DIM_HEAD, axis=1).astype(f32)   # (33, HD)

    wq_cat = jnp.transpose(params["wq"], (1, 0, 2)).reshape(DIM, HD)
    wk_cat = jnp.transpose(params["wk"], (1, 0, 2)).reshape(DIM, HD)
    wv_cat = jnp.transpose(params["wv"], (1, 0, 2)).reshape(DIM, HD)
    wqkv_bf = jnp.concatenate([wq_cat, wk_cat, wv_cat], axis=1).astype(bf16)   # (C, 3HD)
    wqk_f32 = jnp.concatenate([wq_cat, wk_cat], axis=1).astype(f32)            # (C, 2HD)
    wo_bf = params["wo"].reshape(HD, DIM).astype(bf16)
    ln_w = params["ln_w"].reshape(1, DIM).astype(f32)
    ln_b = params["ln_b"].reshape(1, DIM).astype(f32)
    bo = params["bo"].reshape(1, DIM).astype(f32)

    ri = jnp.arange(HM)[:, None]
    ci = jnp.arange(HM)[None, :]
    blk_mask = ((ri // NUM_LANDMARKS) == (ci // NUM_LANDMARKS)).astype(f32)    # (HM, HM)
    neg_mask = (1.0 - blk_mask) * (-1e30)                                      # (HM, HM)
    md_mask = ((jnp.arange(HM)[:, None] // NUM_LANDMARKS)
               == (jnp.arange(HD)[None, :] // DIM_HEAD)).astype(f32)           # (HM, HD)
    eye_g = jnp.eye(PINV_TILE, dtype=f32)                                      # (128, 128)

    # ---- pass 1: landmark / stats kernel, gridded & parallel over batch ----
    lm_args = (x_pad, ln_w, ln_b, wqk_f32, pool, md_mask, neg_mask)
    ln_full, qlbd, klbd, a2bd, stats = pl.pallas_call(
        _make_landmark_kernel(N, pad),
        out_shape=(jax.ShapeDtypeStruct((b, N, DIM), f32),
                   jax.ShapeDtypeStruct((b, HM, HD), f32),
                   jax.ShapeDtypeStruct((b, HM, HD), f32),
                   jax.ShapeDtypeStruct((b, HM, HM), f32),
                   jax.ShapeDtypeStruct((b, 1, 2), f32)),
        grid=(b,),
        in_specs=[_batch_spec(x_pad.shape)]
                 + [_const_spec(a.shape) for a in lm_args[1:]],
        out_specs=[_batch_spec((b, N, DIM)), _batch_spec((b, HM, HD)),
                   _batch_spec((b, HM, HD)), _batch_spec((b, HM, HM)),
                   _batch_spec((b, 1, 2))],
        compiler_params=pltpu.CompilerParams(dimension_semantics=("parallel",)),
    )(*lm_args)

    # global (batch * heads) Moore-Penrose init scalar, exact division (torch.max semantics)
    inv_init = (1.0 / (jnp.max(stats[:, 0, 0]) * jnp.max(stats[:, 0, 1]))
                ).reshape(1, 1).astype(f32)

    # ---- pass 2: main kernel, gridded & parallel over batch ----
    main_kernel, PADN = _make_main_kernel(N)
    main_args = (x_pad, ln_full, wqkv_bf, wo_bf, bo, conv_lane,
                 qlbd, klbd, a2bd, blk_mask, md_mask, eye_g, inv_init)
    in_specs = [
        _batch_spec(x_pad.shape),
        _batch_spec(ln_full.shape),
        _const_spec(wqkv_bf.shape),
        _const_spec(wo_bf.shape),
        _const_spec(bo.shape),
        _const_spec(conv_lane.shape),
        _batch_spec(qlbd.shape),
        _batch_spec(klbd.shape),
        _batch_spec(a2bd.shape),
        _const_spec(blk_mask.shape),
        _const_spec(md_mask.shape),
        _const_spec(eye_g.shape),
        pl.BlockSpec(memory_space=pltpu.MemorySpace.SMEM),           # pinv init scalar
    ]
    out_pad = pl.pallas_call(
        main_kernel,
        out_shape=jax.ShapeDtypeStruct((b, N, DIM), f32),
        grid=(b,),
        in_specs=in_specs,
        out_specs=_batch_spec((b, N, DIM)),
        scratch_shapes=[pltpu.VMEM((PADN, HD), f32)],
        compiler_params=pltpu.CompilerParams(dimension_semantics=("parallel",)),
    )(*main_args)
    return out_pad[:, -n:, :]                                        # drop front padding


# ----------------------------- pure-JAX reference ---------------------------------------
def trans_layer_reference(x, params):
    b, n, _ = x.shape
    pad = (NUM_LANDMARKS - n % NUM_LANDMARKS) % NUM_LANDMARKS
    N = n + pad

    mu = jnp.mean(x, axis=-1, keepdims=True)
    var = jnp.mean((x - mu) ** 2, axis=-1, keepdims=True)
    ln = (x - mu) / jnp.sqrt(var + LN_EPS) * params["ln_w"] + params["ln_b"]
    ln = jnp.pad(ln, ((0, 0), (pad, 0), (0, 0)))

    q = jnp.einsum('bnc,hcd->bhnd', ln, params["wq"]) * SCALE
    k = jnp.einsum('bnc,hcd->bhnd', ln, params["wk"])
    v = jnp.einsum('bnc,hcd->bhnd', ln, params["wv"])

    pool = _pool_matrix(n, N)
    q_l = jnp.einsum('mn,bhnd->bhmd', pool, q)
    k_l = jnp.einsum('mn,bhnd->bhmd', pool, k)

    a1 = jax.nn.softmax(jnp.einsum('bhnd,bhmd->bhnm', q, k_l), axis=-1)
    a2 = jax.nn.softmax(jnp.einsum('bhid,bhjd->bhij', q_l, k_l), axis=-1)
    a3 = jax.nn.softmax(jnp.einsum('bhmd,bhnd->bhmn', q_l, k), axis=-1)

    cmax = jnp.max(jnp.sum(jnp.abs(a2), axis=-1))
    rmax = jnp.max(jnp.sum(jnp.abs(a2), axis=-2))
    z = jnp.swapaxes(a2, -1, -2) / (cmax * rmax)
    eye = jnp.eye(NUM_LANDMARKS, dtype=jnp.float32)
    for _ in range(PINV_ITERS):
        xz = a2 @ z
        z = 0.25 * (z @ (13.0 * eye - xz @ (15.0 * eye - xz @ (7.0 * eye - xz))))

    out = (a1 @ z) @ (a3 @ v)
    conv_mat = _conv_band_matrix(params["conv_w"], N)
    out = out + jnp.einsum('hij,bhjd->bhid', conv_mat, v)
    out = jnp.einsum('bhnd,hdc->bnc', out, params["wo"]) + params["bo"]
    return x + out[:, -n:, :]


# ----------------------------- deterministic params -------------------------------------
def init_params(key):
    ks = jax.random.split(key, 6)
    s = 0.05
    return {
        "ln_w": jnp.ones((DIM,), jnp.float32),
        "ln_b": jnp.zeros((DIM,), jnp.float32),
        "wq": jax.random.normal(ks[0], (HEADS, DIM, DIM_HEAD), jnp.float32) * s,
        "wk": jax.random.normal(ks[1], (HEADS, DIM, DIM_HEAD), jnp.float32) * s,
        "wv": jax.random.normal(ks[2], (HEADS, DIM, DIM_HEAD), jnp.float32) * s,
        "wo": jax.random.normal(ks[3], (HEADS, DIM_HEAD, DIM), jnp.float32) * s,
        "bo": jax.random.normal(ks[4], (DIM,), jnp.float32) * s,
        "conv_w": jax.random.normal(ks[5], (HEADS, RES_KERNEL), jnp.float32) * s,
    }


if __name__ == "__main__":
    key = jax.random.PRNGKey(0)
    kp, kx = jax.random.split(key)
    params = init_params(kp)
    # batch=2, seq=48 (forces the m - n%m front-padding path), dim=64
    x = jax.random.normal(kx, (2, 48, DIM), jnp.float32)

    out = jax.block_until_ready(trans_layer_pallas(x, params))
    ref = jax.block_until_ready(trans_layer_reference(x, params))

    assert out.shape == x.shape
    err = float(jnp.max(jnp.abs(out - ref)))
    assert err < 5e-2, f"max abs err vs reference: {err}"
    print("KERNEL_OK")
</pallas_src>

<mosaic_0001>
module attributes {stable_mosaic.version = 11 : i64} {
  func.func @kernel(%arg0: i32, %arg1: memref<1x64x64xf32, #tpu.memory_space<vmem>>, %arg2: memref<1x64xf32, #tpu.memory_space<vmem>>, %arg3: memref<1x64xf32, #tpu.memory_space<vmem>>, %arg4: memref<64x128xf32, #tpu.memory_space<vmem>>, %arg5: memref<32x64xf32, #tpu.memory_space<vmem>>, %arg6: memref<256x64xf32, #tpu.memory_space<vmem>>, %arg7: memref<256x256xf32, #tpu.memory_space<vmem>>, %arg8: memref<1x64x64xf32, #tpu.memory_space<vmem>>, %arg9: memref<1x256x64xf32, #tpu.memory_space<vmem>>, %arg10: memref<1x256x64xf32, #tpu.memory_space<vmem>>, %arg11: memref<1x256x256xf32, #tpu.memory_space<vmem>>, %arg12: memref<1x1x2xf32, #tpu.memory_space<vmem>>) attributes {dimension_semantics = [#tpu.dimension_semantics<parallel>], iteration_bounds = array<i64: 2>, scalar_prefetch = 0 : i64, scratch_operands = 0 : i64, tpu.core_type = #tpu.core_type<tc>, window_params = [{transform_indices = @transform_0, window_bounds = array<i64: 1, 64, 64>}, {pipeline_mode = #tpu.pipeline_mode<synchronous>, transform_indices = @transform_1, window_bounds = array<i64: 1, 64>}, {pipeline_mode = #tpu.pipeline_mode<synchronous>, transform_indices = @transform_2, window_bounds = array<i64: 1, 64>}, {pipeline_mode = #tpu.pipeline_mode<synchronous>, transform_indices = @transform_3, window_bounds = array<i64: 64, 128>}, {pipeline_mode = #tpu.pipeline_mode<synchronous>, transform_indices = @transform_4, window_bounds = array<i64: 32, 64>}, {pipeline_mode = #tpu.pipeline_mode<synchronous>, transform_indices = @transform_5, window_bounds = array<i64: 256, 64>}, {pipeline_mode = #tpu.pipeline_mode<synchronous>, transform_indices = @transform_6, window_bounds = array<i64: 256, 256>}, {transform_indices = @transform_7, window_bounds = array<i64: 1, 64, 64>}, {transform_indices = @transform_8, window_bounds = array<i64: 1, 256, 64>}, {transform_indices = @transform_9, window_bounds = array<i64: 1, 256, 64>}, {transform_indices = @transform_10, window_bounds = array<i64: 1, 256, 256>}, {transform_indices = @transform_11, window_bounds = array<i64: 1, 1, 2>}]} {
    %c0 = arith.constant 0 : index
    %c0_0 = arith.constant 0 : index
    %0 = vector.load %arg2[%c0, %c0_0] : memref<1x64xf32, #tpu.memory_space<vmem>>, vector<1x64xf32>
    %c0_1 = arith.constant 0 : index
    %c0_2 = arith.constant 0 : index
    %1 = vector.load %arg3[%c0_1, %c0_2] : memref<1x64xf32, #tpu.memory_space<vmem>>, vector<1x64xf32>
    %c0_3 = arith.constant 0 : index
    %c0_4 = arith.constant 0 : index
    %2 = vector.load %arg5[%c0_3, %c0_4] : memref<32x64xf32, #tpu.memory_space<vmem>>, vector<32x64xf32>
    %c0_5 = arith.constant 0 : index
    %c0_6 = arith.constant 0 : index
    %3 = vector.load %arg4[%c0_5, %c0_6] : memref<64x128xf32, #tpu.memory_space<vmem>>, vector<64x128xf32>
    %c0_7 = arith.constant 0 : index
    %c0_8 = arith.constant 0 : index
    %4 = vector.load %arg6[%c0_7, %c0_8] : memref<256x64xf32, #tpu.memory_space<vmem>>, vector<256x64xf32>
    %c0_9 = arith.constant 0 : index
    %c0_10 = arith.constant 0 : index
    %5 = vector.load %arg7[%c0_9, %c0_10] : memref<256x256xf32, #tpu.memory_space<vmem>>, vector<256x256xf32>
    %c0_11 = arith.constant 0 : index
    %c0_12 = arith.constant 0 : index
    %c0_13 = arith.constant 0 : index
    %6 = vector.load %arg1[%c0_11, %c0_12, %c0_13] : memref<1x64x64xf32, #tpu.memory_space<vmem>>, vector<1x64x64xf32>
    %7 = vector.shape_cast %6 : vector<1x64x64xf32> to vector<64x64xf32>
    %8 = tpu.iota {dimensions = array<i32: 0>} : vector<64x1xi32>
    %cst = arith.constant dense<0.000000e+00> : vector<64xf32>
    %9 = vector.multi_reduction <add>, %7, %cst [1] : vector<64x64xf32> to vector<64xf32>
    %10 = vector.shape_cast %9 : vector<64xf32> to vector<64x1xf32>
    %cst_14 = arith.constant 6.400000e+01 : f32
    %11 = vector.broadcast %cst_14 : f32 to vector<64x1xf32>
    %12 = arith.divf %10, %11 : vector<64x1xf32>
    %13 = vector.broadcast %12 : vector<64x1xf32> to vector<64x64xf32>
    %14 = arith.subf %7, %13 : vector<64x64xf32>
    %15 = arith.mulf %14, %14 : vector<64x64xf32>
    %cst_15 = arith.constant dense<0.000000e+00> : vector<64xf32>
    %16 = vector.multi_reduction <add>, %15, %cst_15 [1] : vector<64x64xf32> to vector<64xf32>
    %17 = vector.shape_cast %16 : vector<64xf32> to vector<64x1xf32>
    %cst_16 = arith.constant 6.400000e+01 : f32
    %18 = vector.broadcast %cst_16 : f32 to vector<64x1xf32>
    %19 = arith.divf %17, %18 : vector<64x1xf32>
    %20 = vector.broadcast %12 : vector<64x1xf32> to vector<64x64xf32>
    %21 = arith.subf %7, %20 : vector<64x64xf32>
    %cst_17 = arith.constant 9.99999974E-6 : f32
    %22 = vector.broadcast %cst_17 : f32 to vector<64x1xf32>
    %23 = arith.addf %19, %22 : vector<64x1xf32>
    %24 = math.rsqrt %23 : vector<64x1xf32>
    %25 = vector.broadcast %24 : vector<64x1xf32> to vector<64x64xf32>
    %26 = arith.mulf %21, %25 : vector<64x64xf32>
    %27 = vector.broadcast %0 : vector<1x64xf32> to vector<64x64xf32>
    %28 = arith.mulf %26, %27 : vector<64x64xf32>
    %29 = vector.broadcast %1 : vector<1x64xf32> to vector<64x64xf32>
    %30 = arith.addf %28, %29 : vector<64x64xf32>
    %c16_i32 = arith.constant 16 : i32
    %31 = vector.broadcast %c16_i32 : i32 to vector<64x1xi32>
    %32 = arith.cmpi sge, %8, %31 : vector<64x1xi32>
    %cst_18 = arith.constant 0.000000e+00 : f32
    %33 = vector.shape_cast %32 : vector<64x1xi1> to vector<64x1xi1>
    %34 = vector.broadcast %33 : vector<64x1xi1> to vector<64x64xi1>
    %35 = vector.broadcast %cst_18 : f32 to vector<64x64xf32>
    %36 = arith.select %34, %30, %35 : vector<64x64xi1>, vector<64x64xf32>
    %c0_19 = arith.constant 0 : index
    %c0_20 = arith.constant 0 : index
    %c0_21 = arith.constant 0 : index
    %37 = vector.load %arg8[%c0_19, %c0_20, %c0_21] : memref<1x64x64xf32, #tpu.memory_space<vmem>>, vector<1x64x64xf32>
    %38 = vector.shape_cast %37 : vector<1x64x64xf32> to vector<64x64xf32>
    %39 = vector.shape_cast %36 : vector<64x64xf32> to vector<1x64x64xf32>
    tpu.vector_store %arg8[%c0_19, %c0_20, %c0_21], %39 {strides = array<i32>} : memref<1x64x64xf32, #tpu.memory_space<vmem>>, vector<1x64x64xf32>,
    %cst_22 = arith.constant dense<0.000000e+00> : vector<32x64xf32>
    %40 = tpu.matmul %2, %36, %cst_22 {dimension_numbers = #tpu.dot_dimension_numbers<[1], [0], [0], [1], [0, 0, 1, 1], [], []>} : vector<32x64xf32>, vector<64x64xf32>, vector<32x64xf32> -> vector<32x64xf32>
    %cst_23 = arith.constant dense<0.000000e+00> : vector<32x128xf32>
    %41 = tpu.matmul %40, %3, %cst_23 {dimension_numbers = #tpu.dot_dimension_numbers<[1], [0], [0], [1], [0, 0, 1, 1], [], []>} : vector<32x64xf32>, vector<64x128xf32>, vector<32x128xf32> -> vector<32x128xf32>
    %42 = vector.extract_strided_slice %41 {offsets = [0, 0], sizes = [32, 64], strides = [1, 1]} : vector<32x128xf32> to vector<32x64xf32>
    %cst_24 = arith.constant 0.353553385 : f32
    %43 = vector.broadcast %cst_24 : f32 to vector<32x64xf32>
    %44 = arith.mulf %42, %43 : vector<32x64xf32>
    %45 = vector.extract_strided_slice %41 {offsets = [0, 64], sizes = [32, 64], strides = [1, 1]} : vector<32x128xf32> to vector<32x64xf32>
    %46 = tpu.concatenate %44, %44, %44, %44, %44, %44, %44, %44 in 0 : vector<32x64xf32>, vector<32x64xf32>, vector<32x64xf32>, vector<32x64xf32>, vector<32x64xf32>, vector<32x64xf32>, vector<32x64xf32>, vector<32x64xf32> -> vector<256x64xf32>
    %47 = arith.mulf %46, %4 : vector<256x64xf32>
    %48 = tpu.concatenate %45, %45, %45, %45, %45, %45, %45, %45 in 0 : vector<32x64xf32>, vector<32x64xf32>, vector<32x64xf32>, vector<32x64xf32>, vector<32x64xf32>, vector<32x64xf32>, vector<32x64xf32>, vector<32x64xf32> -> vector<256x64xf32>
    %49 = arith.mulf %48, %4 : vector<256x64xf32>
    %c0_25 = arith.constant 0 : index
    %c0_26 = arith.constant 0 : index
    %c0_27 = arith.constant 0 : index
    %50 = vector.load %arg9[%c0_25, %c0_26, %c0_27] : memref<1x256x64xf32, #tpu.memory_space<vmem>>, vector<1x256x64xf32>
    %51 = vector.shape_cast %50 : vector<1x256x64xf32> to vector<256x64xf32>
    %52 = vector.shape_cast %47 : vector<256x64xf32> to vector<1x256x64xf32>
    tpu.vector_store %arg9[%c0_25, %c0_26, %c0_27], %52 {strides = array<i32>} : memref<1x256x64xf32, #tpu.memory_space<vmem>>, vector<1x256x64xf32>,
    %c0_28 = arith.constant 0 : index
    %c0_29 = arith.constant 0 : index
    %c0_30 = arith.constant 0 : index
    %53 = vector.load %arg10[%c0_28, %c0_29, %c0_30] : memref<1x256x64xf32, #tpu.memory_space<vmem>>, vector<1x256x64xf32>
    %54 = vector.shape_cast %53 : vector<1x256x64xf32> to vector<256x64xf32>
    %55 = vector.shape_cast %49 : vector<256x64xf32> to vector<1x256x64xf32>
    tpu.vector_store %arg10[%c0_28, %c0_29, %c0_30], %55 {strides = array<i32>} : memref<1x256x64xf32, #tpu.memory_space<vmem>>, vector<1x256x64xf32>,
    %cst_31 = arith.constant dense<0.000000e+00> : vector<256x256xf32>
    %56 = tpu.matmul %47, %49, %cst_31 {dimension_numbers = #tpu.dot_dimension_numbers<[1], [1], [0], [0], [0, 0, 1, 0], [], []>} : vector<256x64xf32>, vector<256x64xf32>, vector<256x256xf32> -> vector<256x256xf32>
    %57 = arith.addf %56, %5 : vector<256x256xf32>
    %cst_32 = arith.constant dense<0xFF800000> : vector<256xf32>
    %58 = vector.multi_reduction <maximumf>, %57, %cst_32 [1] : vector<256x256xf32> to vector<256xf32>
    %59 = vector.shape_cast %58 : vector<256xf32> to vector<256x1xf32>
    %60 = vector.broadcast %59 : vector<256x1xf32> to vector<256x256xf32>
    %61 = arith.subf %57, %60 : vector<256x256xf32>
    %62 = math.exp %61 : vector<256x256xf32>
    %cst_33 = arith.constant dense<0.000000e+00> : vector<256xf32>
    %63 = vector.multi_reduction <add>, %62, %cst_33 [1] : vector<256x256xf32> to vector<256xf32>
    %64 = vector.shape_cast %63 : vector<256xf32> to vector<256x1xf32>
    %65 = vector.broadcast %64 : vector<256x1xf32> to vector<256x256xf32>
    %66 = arith.divf %62, %65 : vector<256x256xf32>
    %c0_34 = arith.constant 0 : index
    %c0_35 = arith.constant 0 : index
    %c0_36 = arith.constant 0 : index
    %67 = vector.load %arg11[%c0_34, %c0_35, %c0_36] : memref<1x256x256xf32, #tpu.memory_space<vmem>>, vector<1x256x256xf32>
    %68 = vector.shape_cast %67 : vector<1x256x256xf32> to vector<256x256xf32>
    %69 = vector.shape_cast %66 : vector<256x256xf32> to vector<1x256x256xf32>
    tpu.vector_store %arg11[%c0_34, %c0_35, %c0_36], %69 {strides = array<i32>} : memref<1x256x256xf32, #tpu.memory_space<vmem>>, vector<1x256x256xf32>,
    %cst_37 = arith.constant dense<0.000000e+00> : vector<256xf32>
    %70 = vector.multi_reduction <add>, %66, %cst_37 [1] : vector<256x256xf32> to vector<256xf32>
    %71 = vector.shape_cast %70 : vector<256xf32> to vector<256x1xf32>
    %72 = vector.shape_cast %71 : vector<256x1xf32> to vector<1x256x1xf32>
    %cst_38 = arith.constant dense<0xFF800000> : vector<1xf32>
    %73 = vector.multi_reduction <maximumf>, %72, %cst_38 [1, 2] : vector<1x256x1xf32> to vector<1xf32>
    %74 = vector.shape_cast %73 : vector<1xf32> to vector<1x1x1xf32>
    %75 = vector.extract %74[0, 0, 0] : f32 from vector<1x1x1xf32>
    %76 = vector.broadcast %75 : f32 to vector<1x1xf32>
    %cst_39 = arith.constant dense<0.000000e+00> : vector<256xf32>
    %77 = vector.multi_reduction <add>, %66, %cst_39 [0] : vector<256x256xf32> to vector<256xf32>
    %78 = vector.shape_cast %77 : vector<256xf32> to vector<1x256xf32>
    %79 = vector.shape_cast %78 : vector<1x256xf32> to vector<1x1x256xf32>
    %cst_40 = arith.constant dense<0xFF800000> : vector<1xf32>
    %80 = vector.multi_reduction <maximumf>, %79, %cst_40 [1, 2] : vector<1x1x256xf32> to vector<1xf32>
    %81 = vector.shape_cast %80 : vector<1xf32> to vector<1x1x1xf32>
    %82 = vector.extract %81[0, 0, 0] : f32 from vector<1x1x1xf32>
    %83 = vector.broadcast %82 : f32 to vector<1x1xf32>
    %84 = tpu.concatenate %76, %83 in 1 : vector<1x1xf32>, vector<1x1xf32> -> vector<1x2xf32>
    %c0_41 = arith.constant 0 : index
    %c0_42 = arith.constant 0 : index
    %c0_43 = arith.constant 0 : index
    %85 = vector.load %arg12[%c0_41, %c0_42, %c0_43] : memref<1x1x2xf32, #tpu.memory_space<vmem>>, vector<1x1x2xf32>
    %86 = vector.shape_cast %85 : vector<1x1x2xf32> to vector<1x2xf32>
    %87 = vector.shape_cast %84 : vector<1x2xf32> to vector<1x1x2xf32>
    tpu.vector_store %arg12[%c0_41, %c0_42, %c0_43], %87 {strides = array<i32>} : memref<1x1x2xf32, #tpu.memory_space<vmem>>, vector<1x1x2xf32>,
    return
  }
  func.func @transform_0(%arg0: i32) -> (i32, i32, i32) {
    %c0_i32 = arith.constant 0 : i32
    %c0_i32_0 = arith.constant 0 : i32
    %c0_i32_1 = arith.constant 0 : i32
    return %arg0, %c0_i32, %c0_i32_0 : i32, i32, i32
  }
  func.func @transform_1(%arg0: i32) -> (i32, i32) {
    %c0_i32 = arith.constant 0 : i32
    %c0_i32_0 = arith.constant 0 : i32
    %c0_i32_1 = arith.constant 0 : i32
    return %c0_i32, %c0_i32_0 : i32, i32
  }
  func.func @transform_2(%arg0: i32) -> (i32, i32) {
    %c0_i32 = arith.constant 0 : i32
    %c0_i32_0 = arith.constant 0 : i32
    %c0_i32_1 = arith.constant 0 : i32
    return %c0_i32, %c0_i32_0 : i32, i32
  }
  func.func @transform_3(%arg0: i32) -> (i32, i32) {
    %c0_i32 = arith.constant 0 : i32
    %c0_i32_0 = arith.constant 0 : i32
    %c0_i32_1 = arith.constant 0 : i32
    return %c0_i32, %c0_i32_0 : i32, i32
  }
  func.func @transform_4(%arg0: i32) -> (i32, i32) {
    %c0_i32 = arith.constant 0 : i32
    %c0_i32_0 = arith.constant 0 : i32
    %c0_i32_1 = arith.constant 0 : i32
    return %c0_i32, %c0_i32_0 : i32, i32
  }
  func.func @transform_5(%arg0: i32) -> (i32, i32) {
    %c0_i32 = arith.constant 0 : i32
    %c0_i32_0 = arith.constant 0 : i32
    %c0_i32_1 = arith.constant 0 : i32
    return %c0_i32, %c0_i32_0 : i32, i32
  }
  func.func @transform_6(%arg0: i32) -> (i32, i32) {
    %c0_i32 = arith.constant 0 : i32
    %c0_i32_0 = arith.constant 0 : i32
    %c0_i32_1 = arith.constant 0 : i32
    return %c0_i32, %c0_i32_0 : i32, i32
  }
  func.func @transform_7(%arg0: i32) -> (i32, i32, i32) {
    %c0_i32 = arith.constant 0 : i32
    %c0_i32_0 = arith.constant 0 : i32
    %c0_i32_1 = arith.constant 0 : i32
    return %arg0, %c0_i32, %c0_i32_0 : i32, i32, i32
  }
  func.func @transform_8(%arg0: i32) -> (i32, i32, i32) {
    %c0_i32 = arith.constant 0 : i32
    %c0_i32_0 = arith.constant 0 : i32
    %c0_i32_1 = arith.constant 0 : i32
    return %arg0, %c0_i32, %c0_i32_0 : i32, i32, i32
  }
  func.func @transform_9(%arg0: i32) -> (i32, i32, i32) {
    %c0_i32 = arith.constant 0 : i32
    %c0_i32_0 = arith.constant 0 : i32
    %c0_i32_1 = arith.constant 0 : i32
    return %arg0, %c0_i32, %c0_i32_0 : i32, i32, i32
  }
  func.func @transform_10(%arg0: i32) -> (i32, i32, i32) {
    %c0_i32 = arith.constant 0 : i32
    %c0_i32_0 = arith.constant 0 : i32
    %c0_i32_1 = arith.constant 0 : i32
    return %arg0, %c0_i32, %c0_i32_0 : i32, i32, i32
  }
  func.func @transform_11(%arg0: i32) -> (i32, i32, i32) {
    %c0_i32 = arith.constant 0 : i32
    %c0_i32_0 = arith.constant 0 : i32
    %c0_i32_1 = arith.constant 0 : i32
    return %arg0, %c0_i32, %c0_i32_0 : i32, i32, i32
  }
}

</mosaic_0001>

<llo_original>
// kernel: tpu_custom_call.1
$region0: #{tpu_custom_call.1}
  #allocation0 [shape = 'u32[]', space=smem, size = 0x4, offset = 0x4, fixed_abs, tag = 'smem constant byte address 0x4 - core index']
  #allocation1 [shape = 'u32[144,128]{1,0:T(1,128)}', space=vmem, size = 0x12000, scoped, tag = 'internal scratch']
  %s0 = inlined_call_operand.vmem [shape: f32[2,64,64], index: 0, kind: input, shape index: {}]
  %s1 = inlined_call_operand.vmem [shape: f32[1,64], index: 1, kind: input, shape index: {}]
  %s2 = inlined_call_operand.vmem [shape: f32[1,64], index: 2, kind: input, shape index: {}]
  %s3 = inlined_call_operand.vmem [shape: f32[64,128], index: 3, kind: input, shape index: {}]
  %s4 = inlined_call_operand.vmem [shape: f32[32,64], index: 4, kind: input, shape index: {}]
  %s5 = inlined_call_operand.vmem [shape: f32[256,64], index: 5, kind: input, shape index: {}]
  %s6 = inlined_call_operand.hbm [shape: f32[256,256], index: 6, kind: input, shape index: {}]
  %s7 = inlined_call_operand.hbm [shape: f32[2,64,64], index: 7, kind: output, shape index: {0}]
  %s8 = inlined_call_operand.vmem [shape: f32[2,256,64], index: 8, kind: output, shape index: {1}]
  %s9 = inlined_call_operand.vmem [shape: f32[2,256,64], index: 9, kind: output, shape index: {2}]
  %s10 = inlined_call_operand.hbm [shape: f32[2,256,256], index: 10, kind: output, shape index: {3}]
  %s11 = inlined_call_operand.hbm [shape: f32[2,1,2], index: 11, kind: output, shape index: {4}]
  %12 = xla_tuple %s7, %s8, %s9, %s10, %s11
  %s13 = sld [smem:[#allocation0]]
  $region97: #{tpu_custom_call.1} parent=0
    _
  %s15 = ssub.s32 1, %s13
  %s16 = scalar_select 0, %s15, %s13
  $region1: #{tpu_custom_call.1} parent=0
    #allocation2 [shape = 'u8[262144]{0}', space=vmem, size = 0x40000, scoped, tag = 'input window, operand 6, single buffered']
    #allocation3 [shape = 's32[2]{0}', space=sflag, size = 0x8, scoped, tag = 'scoped memory for tpu_custom_call.1']
    #allocation4 [shape = 's32[2]{0}', space=sflag, size = 0x8, scoped, tag = 'scoped memory for tpu_custom_call.1']
    #allocation5 [shape = 'u8[65536]{0}', space=vmem, size = 0x10000, scoped, tag = 'output window, operand 0']
    #allocation6 [shape = 'u8[524288]{0}', space=vmem, size = 0x80000, scoped, tag = 'output window, operand 3']
    #allocation7 [shape = 's32[2]{0}', space=sflag, size = 0x8, scoped, tag = 'scoped memory for tpu_custom_call.1']
    #allocation8 [shape = 'u8[1024]{0}', space=vmem, size = 0x400, scoped, tag = 'output window, operand 4']
    %17 = vsyncpa [#allocation3], 0
    %18 = vsyncpa [#allocation4], 0
    %s19 = scalar_lea.sflag [#allocation4], 1
    %20 = vsyncpa %s19, 0
    %21 = vsyncpa [#allocation7], 0
    %s22 = scalar_lea.sflag [#allocation7], 1
    %23 = vsyncpa %s22, 0
    loop: start=0, step=1, limit=4
    $region2: #{tpu_custom_call.1} parent=1 // loop_pre_header
      _
    $region3: #{tpu_custom_call.1} parent=1 // loop_header
      %s25 = sphi 0, %s29
      %p26 = scmp.ge.s32.totalorder %s25, 4
      %s35 = sphi 0, %s37
      %s38 = sphi 0, %s35
      %s39 = sphi 0, %s38
      %s55 = sphi 0, %s39
      %s59 = sphi 0, %s59
      %s61 = sphi 0, %s59
      %s62 = sphi 0, %s61
      %s76 = sphi 0, %s62
      %s80 = sphi 0, %s80
      %s82 = sphi 0, %s80
      %s83 = sphi 0, %s82
      %s97 = sphi 0, %s83
      %s101 = sphi 0, %s101
      %s103 = sphi 0, %s101
      %s104 = sphi 0, %s103
      %s118 = sphi 0, %s104
      %s122 = sphi 0, %s122
      %s124 = sphi 0, %s122
      %s125 = sphi 0, %s124
      %s139 = sphi 0, %s125
      %s143 = sphi 0, %s143
      %s145 = sphi 0, %s143
      %s146 = sphi 0, %s145
      %s160 = sphi 0, %s146
      %s164 = sphi 0, %s164
      %s166 = sphi 0, %s164
      %s167 = sphi 0, %s166
      %s181 = sphi 0, %s167
      %s187 = sphi 0, %s189
      %s190 = sphi 0, %s187
      %s191 = sphi 0, %s190
      %s207 = sphi 0, %s191
      %s213 = sphi 0, %s215
      %s216 = sphi 0, %s213
      %s217 = sphi 0, %s216
      %s233 = sphi 0, %s217
      %s239 = sphi 0, %s241
      %s242 = sphi 0, %s239
      %s243 = sphi 0, %s242
      %s259 = sphi 0, %s243
      %s265 = sphi 0, %s267
      %s268 = sphi 0, %s265
      %s269 = sphi 0, %s268
      %s285 = sphi 0, %s269
      %s291 = sphi 0, %s293
      %s294 = sphi 0, %s291
      %s295 = sphi 0, %s294
      %s311 = sphi 0, %s295
    $region4: #{tpu_custom_call.1} parent=1 // loop_header_branch
      %28 = sbr.rel (%p26) target = $region8
    $region5: #{tpu_custom_call.1} parent=1 // loop_body
      %s30 = ssub.s32 %s25, 1
      %s31 = ssub.s32 %s25, 2
      %s32 = sadd.s32 %s25, 1
      %s33 = ssub.s32 %s25, %s32
      %p34 = scmp.eq.s32.totalorder %s33, 0
      %s36 = sadd.s32 %s35, 1
      %s37 = scalar_select %p34, %s35, %s36
      %p40 = pneg %p34
      %p41 = scmp.eq.s32.totalorder %s25, 1
      %p42 = por %p40, %p41
      %p43 = scmp.ne.s32.totalorder %s35, %s38
      %p44 = scmp.eq.s32.totalorder %s25, 0
      %p45 = por %p43, %p44
      %p46 = scmp.ne.s32.totalorder %s35, %s38
      %p47 = scmp.eq.s32.totalorder %s30, 1
      %p48 = por %p46, %p47
      %p49 = scmp.ne.s32.totalorder %s38, %s39
      %p50 = scmp.eq.s32.totalorder %s30, 0
      %p51 = por %p49, %p50
      %p52 = scmp.ne.s32.totalorder %s38, %s39
      %p53 = scmp.eq.s32.totalorder %s31, 1
      %p54 = por %p52, %p53
      %p56 = scmp.ne.s32.totalorder %s39, %s55
      %p57 = scmp.eq.s32.totalorder %s31, 0
      %p58 = por %p56, %p57
      %s60 = sadd.s32 %s59, 1
      %p63 = scmp.eq.s32.totalorder %s25, 1
      %p64 = scmp.ne.s32.totalorder %s59, %s61
      %p65 = scmp.eq.s32.totalorder %s25, 0
      %p66 = por %p64, %p65
      %p67 = scmp.ne.s32.totalorder %s59, %s61
      %p68 = scmp.eq.s32.totalorder %s30, 1
      %p69 = por %p67, %p68
      %p70 = scmp.ne.s32.totalorder %s61, %s62
      %p71 = scmp.eq.s32.totalorder %s30, 0
      %p72 = por %p70, %p71
      %p73 = scmp.ne.s32.totalorder %s61, %s62
      %p74 = scmp.eq.s32.totalorder %s31, 1
      %p75 = por %p73, %p74
      %p77 = scmp.ne.s32.totalorder %s62, %s76
      %p78 = scmp.eq.s32.totalorder %s31, 0
      %p79 = por %p77, %p78
      %s81 = sadd.s32 %s80, 1
      %p84 = scmp.eq.s32.totalorder %s25, 1
      %p85 = scmp.ne.s32.totalorder %s80, %s82
      %p86 = scmp.eq.s32.totalorder %s25, 0
      %p87 = por %p85, %p86
      %p88 = scmp.ne.s32.totalorder %s80, %s82
      %p89 = scmp.eq.s32.totalorder %s30, 1
      %p90 = por %p88, %p89
      %p91 = scmp.ne.s32.totalorder %s82, %s83
      %p92 = scmp.eq.s32.totalorder %s30, 0
      %p93 = por %p91, %p92
      %p94 = scmp.ne.s32.totalorder %s82, %s83
      %p95 = scmp.eq.s32.totalorder %s31, 1
      %p96 = por %p94, %p95
      %p98 = scmp.ne.s32.totalorder %s83, %s97
      %p99 = scmp.eq.s32.totalorder %s31, 0
      %p100 = por %p98, %p99
      %s102 = sadd.s32 %s101, 1
      %p105 = scmp.eq.s32.totalorder %s25, 1
      %p106 = scmp.ne.s32.totalorder %s101, %s103
      %p107 = scmp.eq.s32.totalorder %s25, 0
      %p108 = por %p106, %p107
      %p109 = scmp.ne.s32.totalorder %s101, %s103
      %p110 = scmp.eq.s32.totalorder %s30, 1
      %p111 = por %p109, %p110
      %p112 = scmp.ne.s32.totalorder %s103, %s104
      %p113 = scmp.eq.s32.totalorder %s30, 0
      %p114 = por %p112, %p113
      %p115 = scmp.ne.s32.totalorder %s103, %s104
      %p116 = scmp.eq.s32.totalorder %s31, 1
      %p117 = por %p115, %p116
      %p119 = scmp.ne.s32.totalorder %s104, %s118
      %p120 = scmp.eq.s32.totalorder %s31, 0
      %p121 = por %p119, %p120
      %s123 = sadd.s32 %s122, 1
      %p126 = scmp.eq.s32.totalorder %s25, 1
      %p127 = scmp.ne.s32.totalorder %s122, %s124
      %p128 = scmp.eq.s32.totalorder %s25, 0
      %p129 = por %p127, %p128
      %p130 = scmp.ne.s32.totalorder %s122, %s124
      %p131 = scmp.eq.s32.totalorder %s30, 1
      %p132 = por %p130, %p131
      %p133 = scmp.ne.s32.totalorder %s124, %s125
      %p134 = scmp.eq.s32.totalorder %s30, 0
      %p135 = por %p133, %p134
      %p136 = scmp.ne.s32.totalorder %s124, %s125
      %p137 = scmp.eq.s32.totalorder %s31, 1
      %p138 = por %p136, %p137
      %p140 = scmp.ne.s32.totalorder %s125, %s139
      %p141 = scmp.eq.s32.totalorder %s31, 0
      %p142 = por %p140, %p141
      %s144 = sadd.s32 %s143, 1
      %p147 = scmp.eq.s32.totalorder %s25, 1
      %p148 = scmp.ne.s32.totalorder %s143, %s145
      %p149 = scmp.eq.s32.totalorder %s25, 0
      %p150 = por %p148, %p149
      %p151 = scmp.ne.s32.totalorder %s143, %s145
      %p152 = scmp.eq.s32.totalorder %s30, 1
      %p153 = por %p151, %p152
      %p154 = scmp.ne.s32.totalorder %s145, %s146
      %p155 = scmp.eq.s32.totalorder %s30, 0
      %p156 = por %p154, %p155
      %p157 = scmp.ne.s32.totalorder %s145, %s146
      %p158 = scmp.eq.s32.totalorder %s31, 1
      %p159 = por %p157, %p158
      %p161 = scmp.ne.s32.totalorder %s146, %s160
      %p162 = scmp.eq.s32.totalorder %s31, 0
      %p163 = por %p161, %p162
      %s165 = sadd.s32 %s164, 1
      %p168 = scmp.eq.s32.totalorder %s25, 1
      %p169 = scmp.ne.s32.totalorder %s164, %s166
      %p170 = scmp.eq.s32.totalorder %s25, 0
      %p171 = por %p169, %p170
      %p172 = scmp.ne.s32.totalorder %s164, %s166
      %p173 = scmp.eq.s32.totalorder %s30, 1
      %p174 = por %p172, %p173
      %p175 = scmp.ne.s32.totalorder %s166, %s167
      %p176 = scmp.eq.s32.totalorder %s30, 0
      %p177 = por %p175, %p176
      %p178 = scmp.ne.s32.totalorder %s166, %s167
      %p179 = scmp.eq.s32.totalorder %s31, 1
      %p180 = por %p178, %p179
      %p182 = scmp.ne.s32.totalorder %s167, %s181
      %p183 = scmp.eq.s32.totalorder %s31, 0
      %p184 = por %p182, %p183
      %s185 = ssub.s32 %s25, %s32
      %p186 = scmp.eq.s32.totalorder %s185, 0
      %s188 = sadd.s32 %s187, 1
      %s189 = scalar_select %p186, %s187, %s188
      %p192 = pneg %p186
      %p193 = scmp.eq.s32.totalorder %s25, 1
      %p194 = por %p192, %p193
      %p195 = scmp.ne.s32.totalorder %s187, %s190
      %p196 = scmp.eq.s32.totalorder %s25, 0
      %p197 = por %p195, %p196
      %p198 = scmp.ne.s32.totalorder %s187, %s190
      %p199 = scmp.eq.s32.totalorder %s30, 1
      %p200 = por %p198, %p199
      %p201 = scmp.ne.s32.totalorder %s190, %s191
      %p202 = scmp.eq.s32.totalorder %s30, 0
      %p203 = por %p201, %p202
      %p204 = scmp.ne.s32.totalorder %s190, %s191
      %p205 = scmp.eq.s32.totalorder %s31, 1
      %p206 = por %p204, %p205
      %p208 = scmp.ne.s32.totalorder %s191, %s207
      %p209 = scmp.eq.s32.totalorder %s31, 0
      %p210 = por %p208, %p209
      %s211 = ssub.s32 %s25, %s32
      %p212 = scmp.eq.s32.totalorder %s211, 0
      %s214 = sadd.s32 %s213, 1
      %s215 = scalar_select %p212, %s213, %s214
      %p218 = pneg %p212
      %p219 = scmp.eq.s32.totalorder %s25, 1
      %p220 = por %p218, %p219
      %p221 = scmp.ne.s32.totalorder %s213, %s216
      %p222 = scmp.eq.s32.totalorder %s25, 0
      %p223 = por %p221, %p222
      %p224 = scmp.ne.s32.totalorder %s213, %s216
      %p225 = scmp.eq.s32.totalorder %s30, 1
      %p226 = por %p224, %p225
      %p227 = scmp.ne.s32.totalorder %s216, %s217
      %p228 = scmp.eq.s32.totalorder %s30, 0
      %p229 = por %p227, %p228
      %p230 = scmp.ne.s32.totalorder %s216, %s217
      %p231 = scmp.eq.s32.totalorder %s31, 1
      %p232 = por %p230, %p231
      %p234 = scmp.ne.s32.totalorder %s217, %s233
      %p235 = scmp.eq.s32.totalorder %s31, 0
      %p236 = por %p234, %p235
      %s237 = ssub.s32 %s25, %s32
      %p238 = scmp.eq.s32.totalorder %s237, 0
      %s240 = sadd.s32 %s239, 1
      %s241 = scalar_select %p238, %s239, %s240
      %p244 = pneg %p238
      %p245 = scmp.eq.s32.totalorder %s25, 1
      %p246 = por %p244, %p245
      %p247 = scmp.ne.s32.totalorder %s239, %s242
      %p248 = scmp.eq.s32.totalorder %s25, 0
      %p249 = por %p247, %p248
      %p250 = scmp.ne.s32.totalorder %s239, %s242
      %p251 = scmp.eq.s32.totalorder %s30, 1
      %p252 = por %p250, %p251
      %p253 = scmp.ne.s32.totalorder %s242, %s243
      %p254 = scmp.eq.s32.totalorder %s30, 0
      %p255 = por %p253, %p254
      %p256 = scmp.ne.s32.totalorder %s242, %s243
      %p257 = scmp.eq.s32.totalorder %s31, 1
      %p258 = por %p256, %p257
      %p260 = scmp.ne.s32.totalorder %s243, %s259
      %p261 = scmp.eq.s32.totalorder %s31, 0
      %p262 = por %p260, %p261
      %s263 = ssub.s32 %s25, %s32
      %p264 = scmp.eq.s32.totalorder %s263, 0
      %s266 = sadd.s32 %s265, 1
      %s267 = scalar_select %p264, %s265, %s266
      %p270 = pneg %p264
      %p271 = scmp.eq.s32.totalorder %s25, 1
      %p272 = por %p270, %p271
      %p273 = scmp.ne.s32.totalorder %s265, %s268
      %p274 = scmp.eq.s32.totalorder %s25, 0
      %p275 = por %p273, %p274
      %p276 = scmp.ne.s32.totalorder %s265, %s268
      %p277 = scmp.eq.s32.totalorder %s30, 1
      %p278 = por %p276, %p277
      %p279 = scmp.ne.s32.totalorder %s268, %s269
      %p280 = scmp.eq.s32.totalorder %s30, 0
      %p281 = por %p279, %p280
      %p282 = scmp.ne.s32.totalorder %s268, %s269
      %p283 = scmp.eq.s32.totalorder %s31, 1
      %p284 = por %p282, %p283
      %p286 = scmp.ne.s32.totalorder %s269, %s285
      %p287 = scmp.eq.s32.totalorder %s31, 0
      %p288 = por %p286, %p287
      %s289 = ssub.s32 %s25, %s32
      %p290 = scmp.eq.s32.totalorder %s289, 0
      %s292 = sadd.s32 %s291, 1
      %s293 = scalar_select %p290, %s291, %s292
      %p296 = pneg %p290
      %p297 = scmp.eq.s32.totalorder %s25, 1
      %p298 = por %p296, %p297
      %p299 = scmp.ne.s32.totalorder %s291, %s294
      %p300 = scmp.eq.s32.totalorder %s25, 0
      %p301 = por %p299, %p300
      %p302 = scmp.ne.s32.totalorder %s291, %s294
      %p303 = scmp.eq.s32.totalorder %s30, 1
      %p304 = por %p302, %p303
      %p305 = scmp.ne.s32.totalorder %s294, %s295
      %p306 = scmp.eq.s32.totalorder %s30, 0
      %p307 = por %p305, %p306
      %p308 = scmp.ne.s32.totalorder %s294, %s295
      %p309 = scmp.eq.s32.totalorder %s31, 1
      %p310 = por %p308, %p309
      %p312 = scmp.ne.s32.totalorder %s295, %s311
      %p313 = scmp.eq.s32.totalorder %s31, 0
      %p314 = por %p312, %p313
      %p315 = scmp.le.s32.totalorder 1, %s25
      %p316 = scmp.lt.s32.totalorder %s25, 3
      %p317 = pnand %p315, %p316
      %p318 = pneg %p317
      // Predicated region
      $region9: #{tpu_custom_call.1} parent=5 // pred_check
        _
      $region10: #{tpu_custom_call.1} parent=5 // pred_check_branch
        %320 = sbr.rel (%p317) target = $region12
      $region11: #{tpu_custom_call.1} parent=5 // pred_region
        %s321 = ssub.s32 %s25, 1
        // Predicated region
        $region13: #{tpu_custom_call.1} parent=11 // pred_check
          %p322 = pneg %p72
        $region14: #{tpu_custom_call.1} parent=11 // pred_check_branch
          %324 = sbr.rel (%p322) target = $region16
        $region15: #{tpu_custom_call.1} parent=11 // pred_region
          _
        $region16: #{tpu_custom_call.1} parent=11 // pred_fallthru
          _
        // Predicated region
        $region17: #{tpu_custom_call.1} parent=11 // pred_check
          %p325 = pneg %p93
        $region18: #{tpu_custom_call.1} parent=11 // pred_check_branch
          %327 = sbr.rel (%p325) target = $region20
        $region19: #{tpu_custom_call.1} parent=11 // pred_region
          _
        $region20: #{tpu_custom_call.1} parent=11 // pred_fallthru
          _
        // Predicated region
        $region21: #{tpu_custom_call.1} parent=11 // pred_check
          %p328 = pneg %p114
        $region22: #{tpu_custom_call.1} parent=11 // pred_check_branch
          %330 = sbr.rel (%p328) target = $region24
        $region23: #{tpu_custom_call.1} parent=11 // pred_region
          _
        $region24: #{tpu_custom_call.1} parent=11 // pred_fallthru
          _
        // Predicated region
        $region25: #{tpu_custom_call.1} parent=11 // pred_check
          %p331 = pneg %p135
        $region26: #{tpu_custom_call.1} parent=11 // pred_check_branch
          %333 = sbr.rel (%p331) target = $region28
        $region27: #{tpu_custom_call.1} parent=11 // pred_region
          _
        $region28: #{tpu_custom_call.1} parent=11 // pred_fallthru
          _
        // Predicated region
        $region29: #{tpu_custom_call.1} parent=11 // pred_check
          %p334 = pneg %p156
        $region30: #{tpu_custom_call.1} parent=11 // pred_check_branch
          %336 = sbr.rel (%p334) target = $region32
        $region31: #{tpu_custom_call.1} parent=11 // pred_region
          _
        $region32: #{tpu_custom_call.1} parent=11 // pred_fallthru
          _
        // Predicated region
        $region33: #{tpu_custom_call.1} parent=11 // pred_check
          %p337 = pneg %p177
        $region34: #{tpu_custom_call.1} parent=11 // pred_check_branch
          %339 = sbr.rel (%p337) target = $region36
        $region35: #{tpu_custom_call.1} parent=11 // pred_region
          %s341 = ssub.s32 8192, 8192
          %342 = vsyncadd [#allocation3], %s341
          %s343 = sshll.u32 [#allocation2], 4
          %s344 = int_to_ptr.vmem [resolvable:$true] %s343
          %349 = dma.hbm_to_vmem [thread:$0]  %s6, 8192, %s344, [#allocation3], 256, 256, 16
        $region36: #{tpu_custom_call.1} parent=11 // pred_fallthru
          _
      $region12: #{tpu_custom_call.1} parent=5 // pred_fallthru
        _
      %p350 = scmp.lt.s32.totalorder %s25, 2
      // Predicated region
      $region37: #{tpu_custom_call.1} parent=5 // pred_check
        %p351 = pneg %p350
      $region38: #{tpu_custom_call.1} parent=5 // pred_check_branch
        %353 = sbr.rel (%p351) target = $region40
      $region39: #{tpu_custom_call.1} parent=5 // pred_region
        // Predicated region
        $region41: #{tpu_custom_call.1} parent=39 // pred_check
          %p354 = pneg %p45
        $region42: #{tpu_custom_call.1} parent=39 // pred_check_branch
          %356 = sbr.rel (%p354) target = $region44
        $region43: #{tpu_custom_call.1} parent=39 // pred_region
          %p357 = scmp.lt.s32.totalorder %s25, 1
          %s358 = scalar_select %p357, %s25, 1
          %s359 = smul.addr %s358, 8
          %s360 = smul.addr %s359, 8
          %s361 = scalar_lea.vmem %s0, %s360
        $region44: #{tpu_custom_call.1} parent=39 // pred_fallthru
          _
      $region40: #{tpu_custom_call.1} parent=5 // pred_fallthru
        _
      %p362 = scmp.le.s32.totalorder 1, %s25
      %p363 = scmp.lt.s32.totalorder %s25, 3
      %p364 = pnand %p362, %p363
      %p365 = pneg %p364
      // Predicated region
      $region45: #{tpu_custom_call.1} parent=5 // pred_check
        _
      $region46: #{tpu_custom_call.1} parent=5 // pred_check_branch
        %367 = sbr.rel (%p364) target = $region48
      $region47: #{tpu_custom_call.1} parent=5 // pred_region
        %s368 = ssub.s32 %s25, 1
        // Predicated region
        $region49: #{tpu_custom_call.1} parent=47 // pred_check
          %p369 = pneg %p177
        $region50: #{tpu_custom_call.1} parent=47 // pred_check_branch
          %371 = sbr.rel (%p369) target = $region52
        $region51: #{tpu_custom_call.1} parent=47 // pred_region
          %372 = dma.done [#allocation3], 8192
        $region52: #{tpu_custom_call.1} parent=47 // pred_fallthru
          _
        %p373 = scmp.lt.s32.totalorder %s30, 1
        %s374 = scalar_select %p373, %s30, 1
        %s375 = smul.addr %s374, 8
        %s376 = smul.addr %s375, 8
        %s377 = scalar_lea.vmem %s0, %s376
        %p378 = pneg %p51
        %p379 = pneg %p48
        %p380 = pneg %p72
        %p381 = pneg %p69
        %p382 = pneg %p93
        %p383 = pneg %p90
        %p384 = pneg %p114
        %p385 = pneg %p111
        %p386 = pneg %p135
        %p387 = pneg %p132
        %p388 = pneg %p156
        %p389 = pneg %p153
        %p390 = pneg %p177
        %p391 = pneg %p174
        %p392 = pneg %p203
        %p393 = pneg %p200
        %s394 = sand.u32 %s190, 1
        %s395 = scalar_lea.sflag [#allocation4], %s394
        %s396 = sand.u32 %s190, 1
        %s397 = smul.addr %s396, 64
        %s398 = scalar_lea.vmem [#allocation5], %s397
        %p399 = pneg %p229
        %p400 = pneg %p226
        %p401 = scmp.lt.s32.totalorder %s30, 1
        %s402 = scalar_select %p401, %s30, 1
        %s403 = smul.addr %s402, 32
        %s404 = smul.addr %s403, 8
        %s405 = scalar_lea.vmem %s8, %s404
        %p406 = pneg %p255
        %p407 = pneg %p252
        %p408 = scmp.lt.s32.totalorder %s30, 1
        %s409 = scalar_select %p408, %s30, 1
        %s410 = smul.addr %s409, 32
        %s411 = smul.addr %s410, 8
        %s412 = scalar_lea.vmem %s9, %s411
        %p413 = pneg %p281
        %p414 = pneg %p278
        %s415 = sand.u32 %s30, 1
        %s416 = scalar_lea.sflag [#allocation7], %s415
        %s417 = sand.u32 %s268, 1
        %s418 = smul.addr %s417, 512
        %s419 = scalar_lea.vmem [#allocation6], %s418
        %p420 = pneg %p307
        %p421 = pneg %p304
        %s422 = sand.u32 %s30, 1
        %s423 = scalar_lea.sflag [#allocation7], %s422
        %s424 = sand.u32 %s294, 1
        %s425 = scalar_lea.vmem [#allocation8], %s424
        %p426 = scmp.lt.s32.totalorder %s30, 1
        %s427 = scalar_select %p426, %s30, 1
        %s428 = smul.addr %s427, 8
        %s429 = smul.addr %s428, 8
        %s430 = scalar_lea.vmem %s0, %s429
        %p431 = scmp.lt.s32.totalorder %s30, 1
        %s432 = scalar_select %p431, %s30, 1
        %s433 = smul.addr %s432, 32
        %s434 = smul.addr %s433, 8
        %s435 = scalar_lea.vmem %s8, %s434
        %p436 = scmp.lt.s32.totalorder %s30, 1
        %s437 = scalar_select %p436, %s30, 1
        %s438 = smul.addr %s437, 32
        %s439 = smul.addr %s438, 8
        %s440 = scalar_lea.vmem %s9, %s439
        %v441 = vld [vmem:[%s1] sm:$0x1]
        %v442 = vld [vmem:[%s2] sm:$0x1]
        %v443 = vld [vmem:[%s4] sm:$0xff]
        %v444 = vld [vmem:[%s4 + $0x8] sm:$0xff]
        %v445 = vld [vmem:[%s4 + $0x10] sm:$0xff]
        %v446 = vld [vmem:[%s4 + $0x18] sm:$0xff]
        %v447 = vld [vmem:[%s3] sm:$0xff]
        %v448 = vld [vmem:[%s3 + $0x8] sm:$0xff]
        %v449 = vld [vmem:[%s3 + $0x10] sm:$0xff]
        %v450 = vld [vmem:[%s3 + $0x18] sm:$0xff]
        %v451 = vld [vmem:[%s3 + $0x20] sm:$0xff]
        %v452 = vld [vmem:[%s3 + $0x28] sm:$0xff]
        %v453 = vld [vmem:[%s3 + $0x30] sm:$0xff]
        %v454 = vld [vmem:[%s3 + $0x38] sm:$0xff]
        %v455 = vld [vmem:[%s5] sm:$0xff]
        %v456 = vld [vmem:[%s5 + $0x8] sm:$0xff]
        %v457 = vld [vmem:[%s5 + $0x10] sm:$0xff]
        %v458 = vld [vmem:[%s5 + $0x18] sm:$0xff]
        %v459 = vld [vmem:[%s5 + $0x20] sm:$0xff]
        %v460 = vld [vmem:[%s5 + $0x28] sm:$0xff]
        %v461 = vld [vmem:[%s5 + $0x30] sm:$0xff]
        %v462 = vld [vmem:[%s5 + $0x38] sm:$0xff]
        %v463 = vld [vmem:[%s5 + $0x40] sm:$0xff]
        %v464 = vld [vmem:[%s5 + $0x48] sm:$0xff]
        %v465 = vld [vmem:[%s5 + $0x50] sm:$0xff]
        %v466 = vld [vmem:[%s5 + $0x58] sm:$0xff]
        %v467 = vld [vmem:[%s5 + $0x60] sm:$0xff]
        %v468 = vld [vmem:[%s5 + $0x68] sm:$0xff]
        %v469 = vld [vmem:[%s5 + $0x70] sm:$0xff]
        %v470 = vld [vmem:[%s5 + $0x78] sm:$0xff]
        %v471 = vld [vmem:[%s5 + $0x80] sm:$0xff]
        %v472 = vld [vmem:[%s5 + $0x88] sm:$0xff]
        %v473 = vld [vmem:[%s5 + $0x90] sm:$0xff]
        %v474 = vld [vmem:[%s5 + $0x98] sm:$0xff]
        %v475 = vld [vmem:[%s5 + $0xa0] sm:$0xff]
        %v476 = vld [vmem:[%s5 + $0xa8] sm:$0xff]
        %v477 = vld [vmem:[%s5 + $0xb0] sm:$0xff]
        %v478 = vld [vmem:[%s5 + $0xb8] sm:$0xff]
        %v479 = vld [vmem:[%s5 + $0xc0] sm:$0xff]
        %v480 = vld [vmem:[%s5 + $0xc8] sm:$0xff]
        %v481 = vld [vmem:[%s5 + $0xd0] sm:$0xff]
        %v482 = vld [vmem:[%s5 + $0xd8] sm:$0xff]
        %v483 = vld [vmem:[%s5 + $0xe0] sm:$0xff]
        %v484 = vld [vmem:[%s5 + $0xe8] sm:$0xff]
        %v485 = vld [vmem:[%s5 + $0xf0] sm:$0xff]
        %v486 = vld [vmem:[%s5 + $0xf8] sm:$0xff]
        %v487 = vld [vmem:[#allocation2] sm:$0xff]
        %v488 = vld [vmem:[#allocation2 + $0x8] sm:$0xff]
        %v489 = vld [vmem:[#allocation2 + $0x10] sm:$0xff]
        %v490 = vld [vmem:[#allocation2 + $0x18] sm:$0xff]
        %v491 = vld [vmem:[#allocation2 + $0x20] sm:$0xff]
        %v492 = vld [vmem:[#allocation2 + $0x28] sm:$0xff]
        %v493 = vld [vmem:[#allocation2 + $0x30] sm:$0xff]
        %v494 = vld [vmem:[#allocation2 + $0x38] sm:$0xff]
        %v495 = vld [vmem:[#allocation2 + $0x40] sm:$0xff]
        %v496 = vld [vmem:[#allocation2 + $0x48] sm:$0xff]
        %v497 = vld [vmem:[#allocation2 + $0x50] sm:$0xff]
        %v498 = vld [vmem:[#allocation2 + $0x58] sm:$0xff]
        %v499 = vld [vmem:[#allocation2 + $0x60] sm:$0xff]
        %v500 = vld [vmem:[#allocation2 + $0x68] sm:$0xff]
        %v501 = vld [vmem:[#allocation2 + $0x70] sm:$0xff]
        %v502 = vld [vmem:[#allocation2 + $0x78] sm:$0xff]
        %v503 = vld [vmem:[#allocation2 + $0x80] sm:$0xff]
        %v504 = vld [vmem:[#allocation2 + $0x88] sm:$0xff]
        %v505 = vld [vmem:[#allocation2 + $0x90] sm:$0xff]
        %v506 = vld [vmem:[#allocation2 + $0x98] sm:$0xff]
        %v507 = vld [vmem:[#allocation2 + $0xa0] sm:$0xff]
        %v508 = vld [vmem:[#allocation2 + $0xa8] sm:$0xff]
        %v509 = vld [vmem:[#allocation2 + $0xb0] sm:$0xff]
        %v510 = vld [vmem:[#allocation2 + $0xb8] sm:$0xff]
        %v511 = vld [vmem:[#allocation2 + $0xc0] sm:$0xff]
        %v512 = vld [vmem:[#allocation2 + $0xc8] sm:$0xff]
        %v513 = vld [vmem:[#allocation2 + $0xd0] sm:$0xff]
        %v514 = vld [vmem:[#allocation2 + $0xd8] sm:$0xff]
        %v515 = vld [vmem:[#allocation2 + $0xe0] sm:$0xff]
        %v516 = vld [vmem:[#allocation2 + $0xe8] sm:$0xff]
        %v517 = vld [vmem:[#allocation2 + $0xf0] sm:$0xff]
        %v518 = vld [vmem:[#allocation2 + $0xf8] sm:$0xff]
        %v519 = vld [vmem:[#allocation2 + $0x100] sm:$0xff]
        %v520 = vld [vmem:[#allocation2 + $0x108] sm:$0xff]
        %v521 = vld [vmem:[#allocation2 + $0x110] sm:$0xff]
        %v522 = vld [vmem:[#allocation2 + $0x118] sm:$0xff]
        %v523 = vld [vmem:[#allocation2 + $0x120] sm:$0xff]
        %v524 = vld [vmem:[#allocation2 + $0x128] sm:$0xff]
        %v525 = vld [vmem:[#allocation2 + $0x130] sm:$0xff]
        %v526 = vld [vmem:[#allocation2 + $0x138] sm:$0xff]
        %v527 = vld [vmem:[#allocation2 + $0x140] sm:$0xff]
        %v528 = vld [vmem:[#allocation2 + $0x148] sm:$0xff]
        %v529 = vld [vmem:[#allocation2 + $0x150] sm:$0xff]
        %v530 = vld [vmem:[#allocation2 + $0x158] sm:$0xff]
        %v531 = vld [vmem:[#allocation2 + $0x160] sm:$0xff]
        %v532 = vld [vmem:[#allocation2 + $0x168] sm:$0xff]
        %v533 = vld [vmem:[#allocation2 + $0x170] sm:$0xff]
        %v534 = vld [vmem:[#allocation2 + $0x178] sm:$0xff]
        %v535 = vld [vmem:[#allocation2 + $0x180] sm:$0xff]
        %v536 = vld [vmem:[#allocation2 + $0x188] sm:$0xff]
        %v537 = vld [vmem:[#allocation2 + $0x190] sm:$0xff]
        %v538 = vld [vmem:[#allocation2 + $0x198] sm:$0xff]
        %v539 = vld [vmem:[#allocation2 + $0x1a0] sm:$0xff]
        %v540 = vld [vmem:[#allocation2 + $0x1a8] sm:$0xff]
        %v541 = vld [vmem:[#allocation2 + $0x1b0] sm:$0xff]
        %v542 = vld [vmem:[#allocation2 + $0x1b8] sm:$0xff]
        %v543 = vld [vmem:[#allocation2 + $0x1c0] sm:$0xff]
        %v544 = vld [vmem:[#allocation2 + $0x1c8] sm:$0xff]
        %v545 = vld [vmem:[#allocation2 + $0x1d0] sm:$0xff]
        %v546 = vld [vmem:[#allocation2 + $0x1d8] sm:$0xff]
        %v547 = vld [vmem:[#allocation2 + $0x1e0] sm:$0xff]
        %v548 = vld [vmem:[#allocation2 + $0x1e8] sm:$0xff]
        %v549 = vld [vmem:[#allocation2 + $0x1f0] sm:$0xff]
        %v550 = vld [vmem:[#allocation2 + $0x1f8] sm:$0xff]
        %v551 = vld [vmem:[%s430] sm:$0xff]
        %v552 = vld [vmem:[%s430 + $0x8] sm:$0xff]
        %v553 = vld [vmem:[%s430 + $0x10] sm:$0xff]
        %v554 = vld [vmem:[%s430 + $0x18] sm:$0xff]
        %v555 = vld [vmem:[%s430 + $0x20] sm:$0xff]
        %v556 = vld [vmem:[%s430 + $0x28] sm:$0xff]
        %v557 = vld [vmem:[%s430 + $0x30] sm:$0xff]
        %v558 = vld [vmem:[%s430 + $0x38] sm:$0xff]
        %v559 = vlaneseq
        %v560 = vshrl.u32 %v559, 7
        %v561 = vadd.s32 %v560, 8
        %v562 = vadd.s32 %v560, 16
        %v563 = vadd.s32 %v560, 24
        %v564 = vadd.s32 %v560, 32
        %v565 = vadd.s32 %v560, 40
        %v566 = vadd.s32 %v560, 48
        %v567 = vadd.s32 %v560, 56
        %vm568 = vcmask 523264
        %v569 = vsel %vm568, %v551, 0.0
        %570 = vadd.xlane.f32.xlu0 %v569
        %v571 = vpop.xlane.xlu0 %570
        %v572 = vsel %vm568, %v552, 0.0
        %573 = vadd.xlane.f32.xlu0 %v572
        %v574 = vpop.xlane.xlu0 %573
        %v575 = vsel %vm568, %v553, 0.0
        %576 = vadd.xlane.f32.xlu0 %v575
        %v577 = vpop.xlane.xlu0 %576
        %v578 = vsel %vm568, %v554, 0.0
        %579 = vadd.xlane.f32.xlu0 %v578
        %v580 = vpop.xlane.xlu0 %579
        %v581 = vsel %vm568, %v555, 0.0
        %582 = vadd.xlane.f32.xlu0 %v581
        %v583 = vpop.xlane.xlu0 %582
        %v584 = vsel %vm568, %v556, 0.0
        %585 = vadd.xlane.f32.xlu0 %v584
        %v586 = vpop.xlane.xlu0 %585
        %v587 = vsel %vm568, %v557, 0.0
        %588 = vadd.xlane.f32.xlu0 %v587
        %v589 = vpop.xlane.xlu0 %588
        %v590 = vsel %vm568, %v558, 0.0
        %591 = vadd.xlane.f32.xlu0 %v590
        %v592 = vpop.xlane.xlu0 %591
        %v593 = vrcp.pop 64.0
        %v594 = vmul.f32 %v571, %v593
        %v595 = vmul.f32 %v574, %v593
        %v596 = vmul.f32 %v577, %v593
        %v597 = vmul.f32 %v580, %v593
        %v598 = vmul.f32 %v583, %v593
        %v599 = vmul.f32 %v586, %v593
        %v600 = vmul.f32 %v589, %v593
        %v601 = vmul.f32 %v592, %v593
        %v602 = vsub.f32 %v551, %v594
        %v603 = vsub.f32 %v552, %v595
        %v604 = vsub.f32 %v553, %v596
        %v605 = vsub.f32 %v554, %v597
        %v606 = vsub.f32 %v555, %v598
        %v607 = vsub.f32 %v556, %v599
        %v608 = vsub.f32 %v557, %v600
        %v609 = vsub.f32 %v558, %v601
        %v610 = vmul.f32 %v602, %v602
        %v611 = vmul.f32 %v603, %v603
        %v612 = vmul.f32 %v604, %v604
        %v613 = vmul.f32 %v605, %v605
        %v614 = vmul.f32 %v606, %v606
        %v615 = vmul.f32 %v607, %v607
        %v616 = vmul.f32 %v608, %v608
        %v617 = vmul.f32 %v609, %v609
        %v618 = vsel %vm568, %v610, 0.0
        %619 = vadd.xlane.f32.xlu0 %v618
        %v620 = vpop.xlane.xlu0 %619
        %v621 = vsel %vm568, %v611, 0.0
        %622 = vadd.xlane.f32.xlu0 %v621
        %v623 = vpop.xlane.xlu0 %622
        %v624 = vsel %vm568, %v612, 0.0
        %625 = vadd.xlane.f32.xlu0 %v624
        %v626 = vpop.xlane.xlu0 %625
        %v627 = vsel %vm568, %v613, 0.0
        %628 = vadd.xlane.f32.xlu0 %v627
        %v629 = vpop.xlane.xlu0 %628
        %v630 = vsel %vm568, %v614, 0.0
        %631 = vadd.xlane.f32.xlu0 %v630
        %v632 = vpop.xlane.xlu0 %631
        %v633 = vsel %vm568, %v615, 0.0
        %634 = vadd.xlane.f32.xlu0 %v633
        %v635 = vpop.xlane.xlu0 %634
        %v636 = vsel %vm568, %v616, 0.0
        %637 = vadd.xlane.f32.xlu0 %v636
        %v638 = vpop.xlane.xlu0 %637
        %v639 = vsel %vm568, %v617, 0.0
        %640 = vadd.xlane.f32.xlu0 %v639
        %v641 = vpop.xlane.xlu0 %640
        %v642 = vmul.f32 %v620, %v593
        %v643 = vmul.f32 %v623, %v593
        %v644 = vmul.f32 %v626, %v593
        %v645 = vmul.f32 %v629, %v593
        %v646 = vmul.f32 %v632, %v593
        %v647 = vmul.f32 %v635, %v593
        %v648 = vmul.f32 %v638, %v593
        %v649 = vmul.f32 %v641, %v593
        %v650 = vadd.f32 %v642, 1e-05
        %v651 = vadd.f32 %v643, 1e-05
        %v652 = vadd.f32 %v644, 1e-05
        %v653 = vadd.f32 %v645, 1e-05
        %v654 = vadd.f32 %v646, 1e-05
        %v655 = vadd.f32 %v647, 1e-05
        %v656 = vadd.f32 %v648, 1e-05
        %v657 = vadd.f32 %v649, 1e-05
        %v658 = vrsqrt.pop %v650
        %v659 = vrsqrt.pop %v651
        %v660 = vrsqrt.pop %v652
        %v661 = vrsqrt.pop %v653
        %v662 = vrsqrt.pop %v654
        %v663 = vrsqrt.pop %v655
        %v664 = vrsqrt.pop %v656
        %v665 = vrsqrt.pop %v657
        %v666 = vmul.f32 %v602, %v658
        %v667 = vmul.f32 %v603, %v659
        %v668 = vmul.f32 %v604, %v660
        %v669 = vmul.f32 %v605, %v661
        %v670 = vmul.f32 %v606, %v662
        %v671 = vmul.f32 %v607, %v663
        %v672 = vmul.f32 %v608, %v664
        %v673 = vmul.f32 %v609, %v665
        %v675 = vlaneseq
        %v676 = vshrl.u32 %v675, 7
        %v677 = vsub.s32 0, %v676
        %v678 = vrot.slane %v441, %v677
        %v680 = vmul.f32 %v666, %v678
        %v681 = vmul.f32 %v667, %v678
        %v682 = vmul.f32 %v668, %v678
        %v683 = vmul.f32 %v669, %v678
        %v684 = vmul.f32 %v670, %v678
        %v685 = vmul.f32 %v671, %v678
        %v686 = vmul.f32 %v672, %v678
        %v687 = vmul.f32 %v673, %v678
        %v689 = vlaneseq
        %v690 = vshrl.u32 %v689, 7
        %v691 = vsub.s32 0, %v690
        %v692 = vrot.slane %v442, %v691
        %v694 = vadd.f32 %v680, %v692
        %v695 = vadd.f32 %v681, %v692
        %v696 = vadd.f32 %v682, %v692
        %v697 = vadd.f32 %v683, %v692
        %v698 = vadd.f32 %v684, %v692
        %v699 = vadd.f32 %v685, %v692
        %v700 = vadd.f32 %v686, %v692
        %v701 = vadd.f32 %v687, %v692
        %vm702 = vcmp.ge.s32.totalorder %v560, 16
        %vm703 = vcmp.ge.s32.totalorder %v561, 16
        %vm704 = vcmp.ge.s32.totalorder %v562, 16
        %vm705 = vcmp.ge.s32.totalorder %v563, 16
        %vm706 = vcmp.ge.s32.totalorder %v564, 16
        %vm707 = vcmp.ge.s32.totalorder %v565, 16
        %vm708 = vcmp.ge.s32.totalorder %v566, 16
        %vm709 = vcmp.ge.s32.totalorder %v567, 16
        %v710 = vsel %vm702, 1, 0
        %v711 = vsel %vm703, 1, 0
        %v712 = vsel %vm704, 1, 0
        %v713 = vsel %vm705, 1, 0
        %v714 = vsel %vm706, 1, 0
        %v715 = vsel %vm707, 1, 0
        %v716 = vsel %vm708, 1, 0
        %v717 = vsel %vm709, 1, 0
        %vm718 = vcmp.eq.s32.totalorder %v710, 1
        %vm719 = vcmp.eq.s32.totalorder %v711, 1
        %vm720 = vcmp.eq.s32.totalorder %v712, 1
        %vm721 = vcmp.eq.s32.totalorder %v713, 1
        %vm722 = vcmp.eq.s32.totalorder %v714, 1
        %vm723 = vcmp.eq.s32.totalorder %v715, 1
        %vm724 = vcmp.eq.s32.totalorder %v716, 1
        %vm725 = vcmp.eq.s32.totalorder %v717, 1
        %v726 = vsel %vm718, %v694, 0.0
        %v727 = vsel %vm719, %v695, 0.0
        %v728 = vsel %vm720, %v696, 0.0
        %v729 = vsel %vm721, %v697, 0.0
        %v730 = vsel %vm722, %v698, 0.0
        %v731 = vsel %vm723, %v699, 0.0
        %v732 = vsel %vm724, %v700, 0.0
        %v733 = vsel %vm725, %v701, 0.0
        %734 = vst.msk [vmem:[%s398] sm:$0xff] %vm568, %v726
        %735 = vst.msk [vmem:[%s398 + $0x8] sm:$0xff] %vm568, %v727
        %736 = vst.msk [vmem:[%s398 + $0x10] sm:$0xff] %vm568, %v728
        %737 = vst.msk [vmem:[%s398 + $0x18] sm:$0xff] %vm568, %v729
        %738 = vst.msk [vmem:[%s398 + $0x20] sm:$0xff] %vm568, %v730
        %739 = vst.msk [vmem:[%s398 + $0x28] sm:$0xff] %vm568, %v731
        %740 = vst.msk [vmem:[%s398 + $0x30] sm:$0xff] %vm568, %v732
        %741 = vst.msk [vmem:[%s398 + $0x38] sm:$0xff] %vm568, %v733
        %v743 = vsel %vm568, %v443, 0
        %v746 = vsel %vm568, %v444, 0
        %v749 = vsel %vm568, %v445, 0
        %v752 = vsel %vm568, %v446, 0
        %754 = vmatprep.subr.mxu0 0.0
        %755 = vmatpush1.msra.mxu0 0.0
        %756 = vmatprep.subr.mxu0 0.0
        %757 = vmatpush1.msra.mxu0 0.0
        %758 = vmatprep.subr.mxu0 0.0
        %759 = vmatpush1.msra.mxu0 0.0
        %760 = vmatprep.subr.mxu0 0.0
        %761 = vmatpush1.msra.mxu0 0.0
        %762 = vmatprep.subr.mxu0 0.0
        %763 = vmatpush1.msra.mxu0 0.0
        %764 = vmatprep.subr.mxu0 0.0
        %765 = vmatpush1.msra.mxu0 0.0
        %766 = vmatprep.subr.mxu0 0.0
        %767 = vmatpush1.msra.mxu0 0.0
        %768 = vmatprep.subr.mxu0 0.0
        %769 = vmatpush1.msra.mxu0 0.0
        %770 = vmatprep.subr.mxu0 0.0
        %771 = vmatpush1.msra.mxu0 %v733
        %772 = vmatprep.subr.mxu0 0.0
        %773 = vmatpush1.msra.mxu0 %v732
        %774 = vmatprep.subr.mxu0 0.0
        %775 = vmatpush1.msra.mxu0 %v731
        %776 = vmatprep.subr.mxu0 0.0
        %777 = vmatpush1.msra.mxu0 %v730
        %778 = vmatprep.subr.mxu0 0.0
        %779 = vmatpush1.msra.mxu0 %v729
        %780 = vmatprep.subr.mxu0 0.0
        %781 = vmatpush1.msra.mxu0 %v728
        %782 = vmatprep.subr.mxu0 0.0
        %783 = vmatpush1.msra.mxu0 %v727
        %784 = vmatprep.subr.mxu0 0.0
        %785 = vmatpush1.msra.mxu0 %v726
        %786 = vmatprep.subr.mxu0 0.0
        %787 = vmatpush2.msra.mxu0 0.0
        %788 = vmatprep.subr.mxu0 0.0
        %789 = vmatpush2.msra.mxu0 0.0
        %790 = vmatprep.subr.mxu0 0.0
        %791 = vmatpush2.msra.mxu0 0.0
        %792 = vmatprep.subr.mxu0 0.0
        %793 = vmatpush2.msra.mxu0 0.0
        %794 = vmatprep.subr.mxu0 0.0
        %795 = vmatpush2.msra.mxu0 0.0
        %796 = vmatprep.subr.mxu0 0.0
        %797 = vmatpush2.msra.mxu0 0.0
        %798 = vmatprep.subr.mxu0 0.0
        %799 = vmatpush2.msra.mxu0 0.0
        %800 = vmatprep.subr.mxu0 0.0
        %801 = vmatpush2.msra.mxu0 0.0
        %802 = vmatprep.subr.mxu0 0.0
        %803 = vmatpush2.msra.mxu0 0.0
        %804 = vmatprep.subr.mxu0 0.0
        %805 = vmatpush2.msra.mxu0 0.0
        %806 = vmatprep.subr.mxu0 0.0
        %807 = vmatpush2.msra.mxu0 0.0
        %808 = vmatprep.subr.mxu0 0.0
        %809 = vmatpush2.msra.mxu0 0.0
        %810 = vmatprep.subr.mxu0 0.0
        %811 = vmatpush2.msra.mxu0 0.0
        %812 = vmatprep.subr.mxu0 0.0
        %813 = vmatpush2.msra.mxu0 0.0
        %814 = vmatprep.subr.mxu0 0.0
        %815 = vmatpush2.msra.mxu0 0.0
        %816 = vmatprep.subr.mxu0 0.0
        %817 = vmatpush2.msra.mxu0 0.0
        %818 = vmatprep.mubr.f32.mxu0 0.0
        %819 = vmatmul.mubr.f32.gmra.mxu0 %v743
        %v820 = vpop.f32.mrf.mxu0
        %v821 = vadd.f32 0.0, %v820
        %v822 = vpop.f32.mrf.mxu0
        %823 = vmatprep.mubr.f32.mxu0 0.0
        %824 = vmatmul.mubr.f32.gmra.mxu0 %v746
        %v825 = vpop.f32.mrf.mxu0
        %v826 = vadd.f32 0.0, %v825
        %v827 = vpop.f32.mrf.mxu0
        %828 = vmatprep.mubr.f32.mxu0 0.0
        %829 = vmatmul.mubr.f32.gmra.mxu0 %v749
        %v830 = vpop.f32.mrf.mxu0
        %v831 = vadd.f32 0.0, %v830
        %v832 = vpop.f32.mrf.mxu0
        %833 = vmatprep.mubr.f32.mxu0 0.0
        %834 = vmatmul.mubr.f32.gmra.mxu0 %v752
        %v835 = vpop.f32.mrf.mxu0
        %v836 = vadd.f32 0.0, %v835
        %v837 = vpop.f32.mrf.mxu0
        %838 = vdwg.mxu0
        %v840 = vsel %vm568, %v821, 0
        %v843 = vsel %vm568, %v826, 0
        %v846 = vsel %vm568, %v831, 0
        %v849 = vsel %vm568, %v836, 0
        %851 = vmatprep.subr.mxu0 0.0
        %852 = vmatpush1.msra.mxu0 0.0
        %853 = vmatprep.subr.mxu0 0.0
        %854 = vmatpush1.msra.mxu0 0.0
        %855 = vmatprep.subr.mxu0 0.0
        %856 = vmatpush1.msra.mxu0 0.0
        %857 = vmatprep.subr.mxu0 0.0
        %858 = vmatpush1.msra.mxu0 0.0
        %859 = vmatprep.subr.mxu0 0.0
        %860 = vmatpush1.msra.mxu0 0.0
        %861 = vmatprep.subr.mxu0 0.0
        %862 = vmatpush1.msra.mxu0 0.0
        %863 = vmatprep.subr.mxu0 0.0
        %864 = vmatpush1.msra.mxu0 0.0
        %865 = vmatprep.subr.mxu0 0.0
        %866 = vmatpush1.msra.mxu0 0.0
        %867 = vmatprep.subr.mxu0 0.0
        %868 = vmatpush1.msra.mxu0 %v454
        %869 = vmatprep.subr.mxu0 0.0
        %870 = vmatpush1.msra.mxu0 %v453
        %871 = vmatprep.subr.mxu0 0.0
        %872 = vmatpush1.msra.mxu0 %v452
        %873 = vmatprep.subr.mxu0 0.0
        %874 = vmatpush1.msra.mxu0 %v451
        %875 = vmatprep.subr.mxu0 0.0
        %876 = vmatpush1.msra.mxu0 %v450
        %877 = vmatprep.subr.mxu0 0.0
        %878 = vmatpush1.msra.mxu0 %v449
        %879 = vmatprep.subr.mxu0 0.0
        %880 = vmatpush1.msra.mxu0 %v448
        %881 = vmatprep.subr.mxu0 0.0
        %882 = vmatpush1.msra.mxu0 %v447
        %883 = vmatprep.subr.mxu0 0.0
        %884 = vmatpush2.msra.mxu0 0.0
        %885 = vmatprep.subr.mxu0 0.0
        %886 = vmatpush2.msra.mxu0 0.0
        %887 = vmatprep.subr.mxu0 0.0
        %888 = vmatpush2.msra.mxu0 0.0
        %889 = vmatprep.subr.mxu0 0.0
        %890 = vmatpush2.msra.mxu0 0.0
        %891 = vmatprep.subr.mxu0 0.0
        %892 = vmatpush2.msra.mxu0 0.0
        %893 = vmatprep.subr.mxu0 0.0
        %894 = vmatpush2.msra.mxu0 0.0
        %895 = vmatprep.subr.mxu0 0.0
        %896 = vmatpush2.msra.mxu0 0.0
        %897 = vmatprep.subr.mxu0 0.0
        %898 = vmatpush2.msra.mxu0 0.0
        %899 = vmatprep.subr.mxu0 0.0
        %900 = vmatpush2.msra.mxu0 0.0
        %901 = vmatprep.subr.mxu0 0.0
        %902 = vmatpush2.msra.mxu0 0.0
        %903 = vmatprep.subr.mxu0 0.0
        %904 = vmatpush2.msra.mxu0 0.0
        %905 = vmatprep.subr.mxu0 0.0
        %906 = vmatpush2.msra.mxu0 0.0
        %907 = vmatprep.subr.mxu0 0.0
        %908 = vmatpush2.msra.mxu0 0.0
        %909 = vmatprep.subr.mxu0 0.0
        %910 = vmatpush2.msra.mxu0 0.0
        %911 = vmatprep.subr.mxu0 0.0
        %912 = vmatpush2.msra.mxu0 0.0
        %913 = vmatprep.subr.mxu0 0.0
        %914 = vmatpush2.msra.mxu0 0.0
        %915 = vmatprep.mubr.f32.mxu0 0.0
        %916 = vmatmul.mubr.f32.gmra.mxu0 %v840
        %v917 = vpop.f32.mrf.mxu0
        %v918 = vadd.f32 0.0, %v917
        %v919 = vpop.f32.mrf.mxu0
        %920 = vmatprep.mubr.f32.mxu0 0.0
        %921 = vmatmul.mubr.f32.gmra.mxu0 %v843
        %v922 = vpop.f32.mrf.mxu0
        %v923 = vadd.f32 0.0, %v922
        %v924 = vpop.f32.mrf.mxu0
        %925 = vmatprep.mubr.f32.mxu0 0.0
        %926 = vmatmul.mubr.f32.gmra.mxu0 %v846
        %v927 = vpop.f32.mrf.mxu0
        %v928 = vadd.f32 0.0, %v927
        %v929 = vpop.f32.mrf.mxu0
        %930 = vmatprep.mubr.f32.mxu0 0.0
        %931 = vmatmul.mubr.f32.gmra.mxu0 %v849
        %v932 = vpop.f32.mrf.mxu0
        %v933 = vadd.f32 0.0, %v932
        %v934 = vpop.f32.mrf.mxu0
        %935 = vdwg.mxu0
        %v936 = vmul.f32 %v918, 0.35355338
        %v937 = vmul.f32 %v923, 0.35355338
        %v938 = vmul.f32 %v928, 0.35355338
        %v939 = vmul.f32 %v933, 0.35355338
        %v940 = vmul.f32 %v936, %v455
        %v941 = vmul.f32 %v937, %v456
        %v942 = vmul.f32 %v938, %v457
        %v943 = vmul.f32 %v939, %v458
        %v944 = vmul.f32 %v936, %v459
        %v945 = vmul.f32 %v937, %v460
        %v946 = vmul.f32 %v938, %v461
        %v947 = vmul.f32 %v939, %v462
        %v948 = vmul.f32 %v936, %v463
        %v949 = vmul.f32 %v937, %v464
        %v950 = vmul.f32 %v938, %v465
        %v951 = vmul.f32 %v939, %v466
        %v952 = vmul.f32 %v936, %v467
        %v953 = vmul.f32 %v937, %v468
        %v954 = vmul.f32 %v938, %v469
        %v955 = vmul.f32 %v939, %v470
        %v956 = vmul.f32 %v936, %v471
        %v957 = vmul.f32 %v937, %v472
        %v958 = vmul.f32 %v938, %v473
        %v959 = vmul.f32 %v939, %v474
        %v960 = vmul.f32 %v936, %v475
        %v961 = vmul.f32 %v937, %v476
        %v962 = vmul.f32 %v938, %v477
        %v963 = vmul.f32 %v939, %v478
        %v964 = vmul.f32 %v936, %v479
        %v965 = vmul.f32 %v937, %v480
        %v966 = vmul.f32 %v938, %v481
        %v967 = vmul.f32 %v939, %v482
        %v968 = vmul.f32 %v936, %v483
        %v969 = vmul.f32 %v937, %v484
        %v970 = vmul.f32 %v938, %v485
        %v971 = vmul.f32 %v939, %v486
        %1004 = vrot.lane.b32.xlu0 %v455, 64
        %v1005 = vpop.permute.xlu0 %1004
        %1006 = vrot.lane.b32.xlu0 %v456, 64
        %v1007 = vpop.permute.xlu0 %1006
        %1008 = vrot.lane.b32.xlu0 %v457, 64
        %v1009 = vpop.permute.xlu0 %1008
        %1010 = vrot.lane.b32.xlu0 %v458, 64
        %v1011 = vpop.permute.xlu0 %1010
        %1012 = vrot.lane.b32.xlu0 %v459, 64
        %v1013 = vpop.permute.xlu0 %1012
        %1014 = vrot.lane.b32.xlu0 %v460, 64
        %v1015 = vpop.permute.xlu0 %1014
        %1016 = vrot.lane.b32.xlu0 %v461, 64
        %v1017 = vpop.permute.xlu0 %1016
        %1018 = vrot.lane.b32.xlu0 %v462, 64
        %v1019 = vpop.permute.xlu0 %1018
        %1020 = vrot.lane.b32.xlu0 %v463, 64
        %v1021 = vpop.permute.xlu0 %1020
        %1022 = vrot.lane.b32.xlu0 %v464, 64
        %v1023 = vpop.permute.xlu0 %1022
        %1024 = vrot.lane.b32.xlu0 %v465, 64
        %v1025 = vpop.permute.xlu0 %1024
        %1026 = vrot.lane.b32.xlu0 %v466, 64
        %v1027 = vpop.permute.xlu0 %1026
        %1028 = vrot.lane.b32.xlu0 %v467, 64
        %v1029 = vpop.permute.xlu0 %1028
        %1030 = vrot.lane.b32.xlu0 %v468, 64
        %v1031 = vpop.permute.xlu0 %1030
        %1032 = vrot.lane.b32.xlu0 %v469, 64
        %v1033 = vpop.permute.xlu0 %1032
        %1034 = vrot.lane.b32.xlu0 %v470, 64
        %v1035 = vpop.permute.xlu0 %1034
        %1036 = vrot.lane.b32.xlu0 %v471, 64
        %v1037 = vpop.permute.xlu0 %1036
        %1038 = vrot.lane.b32.xlu0 %v472, 64
        %v1039 = vpop.permute.xlu0 %1038
        %1040 = vrot.lane.b32.xlu0 %v473, 64
        %v1041 = vpop.permute.xlu0 %1040
        %1042 = vrot.lane.b32.xlu0 %v474, 64
        %v1043 = vpop.permute.xlu0 %1042
        %1044 = vrot.lane.b32.xlu0 %v475, 64
        %v1045 = vpop.permute.xlu0 %1044
        %1046 = vrot.lane.b32.xlu0 %v476, 64
        %v1047 = vpop.permute.xlu0 %1046
        %1048 = vrot.lane.b32.xlu0 %v477, 64
        %v1049 = vpop.permute.xlu0 %1048
        %1050 = vrot.lane.b32.xlu0 %v478, 64
        %v1051 = vpop.permute.xlu0 %1050
        %1052 = vrot.lane.b32.xlu0 %v479, 64
        %v1053 = vpop.permute.xlu0 %1052
        %1054 = vrot.lane.b32.xlu0 %v480, 64
        %v1055 = vpop.permute.xlu0 %1054
        %1056 = vrot.lane.b32.xlu0 %v481, 64
        %v1057 = vpop.permute.xlu0 %1056
        %1058 = vrot.lane.b32.xlu0 %v482, 64
        %v1059 = vpop.permute.xlu0 %1058
        %1060 = vrot.lane.b32.xlu0 %v483, 64
        %v1061 = vpop.permute.xlu0 %1060
        %1062 = vrot.lane.b32.xlu0 %v484, 64
        %v1063 = vpop.permute.xlu0 %1062
        %1064 = vrot.lane.b32.xlu0 %v485, 64
        %v1065 = vpop.permute.xlu0 %1064
        %1066 = vrot.lane.b32.xlu0 %v486, 64
        %v1067 = vpop.permute.xlu0 %1066
        %v1100 = vmul.f32 %v918, %v1005
        %v1101 = vmul.f32 %v923, %v1007
        %v1102 = vmul.f32 %v928, %v1009
        %v1103 = vmul.f32 %v933, %v1011
        %v1104 = vmul.f32 %v918, %v1013
        %v1105 = vmul.f32 %v923, %v1015
        %v1106 = vmul.f32 %v928, %v1017
        %v1107 = vmul.f32 %v933, %v1019
        %v1108 = vmul.f32 %v918, %v1021
        %v1109 = vmul.f32 %v923, %v1023
        %v1110 = vmul.f32 %v928, %v1025
        %v1111 = vmul.f32 %v933, %v1027
        %v1112 = vmul.f32 %v918, %v1029
        %v1113 = vmul.f32 %v923, %v1031
        %v1114 = vmul.f32 %v928, %v1033
        %v1115 = vmul.f32 %v933, %v1035
        %v1116 = vmul.f32 %v918, %v1037
        %v1117 = vmul.f32 %v923, %v1039
        %v1118 = vmul.f32 %v928, %v1041
        %v1119 = vmul.f32 %v933, %v1043
        %v1120 = vmul.f32 %v918, %v1045
        %v1121 = vmul.f32 %v923, %v1047
        %v1122 = vmul.f32 %v928, %v1049
        %v1123 = vmul.f32 %v933, %v1051
        %v1124 = vmul.f32 %v918, %v1053
        %v1125 = vmul.f32 %v923, %v1055
        %v1126 = vmul.f32 %v928, %v1057
        %v1127 = vmul.f32 %v933, %v1059
        %v1128 = vmul.f32 %v918, %v1061
        %v1129 = vmul.f32 %v923, %v1063
        %v1130 = vmul.f32 %v928, %v1065
        %v1131 = vmul.f32 %v933, %v1067
        %1132 = vst.msk [vmem:[%s435] sm:$0xff] %vm568, %v940
        %1133 = vst.msk [vmem:[%s435 + $0x8] sm:$0xff] %vm568, %v941
        %1134 = vst.msk [vmem:[%s435 + $0x10] sm:$0xff] %vm568, %v942
        %1135 = vst.msk [vmem:[%s435 + $0x18] sm:$0xff] %vm568, %v943
        %1136 = vst.msk [vmem:[%s435 + $0x20] sm:$0xff] %vm568, %v944
        %1137 = vst.msk [vmem:[%s435 + $0x28] sm:$0xff] %vm568, %v945
        %1138 = vst.msk [vmem:[%s435 + $0x30] sm:$0xff] %vm568, %v946
        %1139 = vst.msk [vmem:[%s435 + $0x38] sm:$0xff] %vm568, %v947
        %1140 = vst.msk [vmem:[%s435 + $0x40] sm:$0xff] %vm568, %v948
        %1141 = vst.msk [vmem:[%s435 + $0x48] sm:$0xff] %vm568, %v949
        %1142 = vst.msk [vmem:[%s435 + $0x50] sm:$0xff] %vm568, %v950
        %1143 = vst.msk [vmem:[%s435 + $0x58] sm:$0xff] %vm568, %v951
        %1144 = vst.msk [vmem:[%s435 + $0x60] sm:$0xff] %vm568, %v952
        %1145 = vst.msk [vmem:[%s435 + $0x68] sm:$0xff] %vm568, %v953
        %1146 = vst.msk [vmem:[%s435 + $0x70] sm:$0xff] %vm568, %v954
        %1147 = vst.msk [vmem:[%s435 + $0x78] sm:$0xff] %vm568, %v955
        %1148 = vst.msk [vmem:[%s435 + $0x80] sm:$0xff] %vm568, %v956
        %1149 = vst.msk [vmem:[%s435 + $0x88] sm:$0xff] %vm568, %v957
        %1150 = vst.msk [vmem:[%s435 + $0x90] sm:$0xff] %vm568, %v958
        %1151 = vst.msk [vmem:[%s435 + $0x98] sm:$0xff] %vm568, %v959
        %1152 = vst.msk [vmem:[%s435 + $0xa0] sm:$0xff] %vm568, %v960
        %1153 = vst.msk [vmem:[%s435 + $0xa8] sm:$0xff] %vm568, %v961
        %1154 = vst.msk [vmem:[%s435 + $0xb0] sm:$0xff] %vm568, %v962
        %1155 = vst.msk [vmem:[%s435 + $0xb8] sm:$0xff] %vm568, %v963
        %1156 = vst.msk [vmem:[%s435 + $0xc0] sm:$0xff] %vm568, %v964
        %1157 = vst.msk [vmem:[%s435 + $0xc8] sm:$0xff] %vm568, %v965
        %1158 = vst.msk [vmem:[%s435 + $0xd0] sm:$0xff] %vm568, %v966
        %1159 = vst.msk [vmem:[%s435 + $0xd8] sm:$0xff] %vm568, %v967
        %1160 = vst.msk [vmem:[%s435 + $0xe0] sm:$0xff] %vm568, %v968
        %1161 = vst.msk [vmem:[%s435 + $0xe8] sm:$0xff] %vm568, %v969
        %1162 = vst.msk [vmem:[%s435 + $0xf0] sm:$0xff] %vm568, %v970
        %1163 = vst.msk [vmem:[%s435 + $0xf8] sm:$0xff] %vm568, %v971
        %1196 = vrot.lane.b32.xlu0 %v1100, 64
        %v1197 = vpop.permute.xlu0 %1196
        %1198 = vrot.lane.b32.xlu0 %v1101, 64
        %v1199 = vpop.permute.xlu0 %1198
        %1200 = vrot.lane.b32.xlu0 %v1102, 64
        %v1201 = vpop.permute.xlu0 %1200
        %1202 = vrot.lane.b32.xlu0 %v1103, 64
        %v1203 = vpop.permute.xlu0 %1202
        %1204 = vrot.lane.b32.xlu0 %v1104, 64
        %v1205 = vpop.permute.xlu0 %1204
        %1206 = vrot.lane.b32.xlu0 %v1105, 64
        %v1207 = vpop.permute.xlu0 %1206
        %1208 = vrot.lane.b32.xlu0 %v1106, 64
        %v1209 = vpop.permute.xlu0 %1208
        %1210 = vrot.lane.b32.xlu0 %v1107, 64
        %v1211 = vpop.permute.xlu0 %1210
        %1212 = vrot.lane.b32.xlu0 %v1108, 64
        %v1213 = vpop.permute.xlu0 %1212
        %1214 = vrot.lane.b32.xlu0 %v1109, 64
        %v1215 = vpop.permute.xlu0 %1214
        %1216 = vrot.lane.b32.xlu0 %v1110, 64
        %v1217 = vpop.permute.xlu0 %1216
        %1218 = vrot.lane.b32.xlu0 %v1111, 64
        %v1219 = vpop.permute.xlu0 %1218
        %1220 = vrot.lane.b32.xlu0 %v1112, 64
        %v1221 = vpop.permute.xlu0 %1220
        %1222 = vrot.lane.b32.xlu0 %v1113, 64
        %v1223 = vpop.permute.xlu0 %1222
        %1224 = vrot.lane.b32.xlu0 %v1114, 64
        %v1225 = vpop.permute.xlu0 %1224
        %1226 = vrot.lane.b32.xlu0 %v1115, 64
        %v1227 = vpop.permute.xlu0 %1226
        %1228 = vrot.lane.b32.xlu0 %v1116, 64
        %v1229 = vpop.permute.xlu0 %1228
        %1230 = vrot.lane.b32.xlu0 %v1117, 64
        %v1231 = vpop.permute.xlu0 %1230
        %1232 = vrot.lane.b32.xlu0 %v1118, 64
        %v1233 = vpop.permute.xlu0 %1232
        %1234 = vrot.lane.b32.xlu0 %v1119, 64
        %v1235 = vpop.permute.xlu0 %1234
        %1236 = vrot.lane.b32.xlu0 %v1120, 64
        %v1237 = vpop.permute.xlu0 %1236
        %1238 = vrot.lane.b32.xlu0 %v1121, 64
        %v1239 = vpop.permute.xlu0 %1238
        %1240 = vrot.lane.b32.xlu0 %v1122, 64
        %v1241 = vpop.permute.xlu0 %1240
        %1242 = vrot.lane.b32.xlu0 %v1123, 64
        %v1243 = vpop.permute.xlu0 %1242
        %1244 = vrot.lane.b32.xlu0 %v1124, 64
        %v1245 = vpop.permute.xlu0 %1244
        %1246 = vrot.lane.b32.xlu0 %v1125, 64
        %v1247 = vpop.permute.xlu0 %1246
        %1248 = vrot.lane.b32.xlu0 %v1126, 64
        %v1249 = vpop.permute.xlu0 %1248
        %1250 = vrot.lane.b32.xlu0 %v1127, 64
        %v1251 = vpop.permute.xlu0 %1250
        %1252 = vrot.lane.b32.xlu0 %v1128, 64
        %v1253 = vpop.permute.xlu0 %1252
        %1254 = vrot.lane.b32.xlu0 %v1129, 64
        %v1255 = vpop.permute.xlu0 %1254
        %1256 = vrot.lane.b32.xlu0 %v1130, 64
        %v1257 = vpop.permute.xlu0 %1256
        %1258 = vrot.lane.b32.xlu0 %v1131, 64
        %v1259 = vpop.permute.xlu0 %1258
        %1292 = vst.msk [vmem:[%s440] sm:$0xff] %vm568, %v1197
        %1293 = vst.msk [vmem:[%s440 + $0x8] sm:$0xff] %vm568, %v1199
        %1294 = vst.msk [vmem:[%s440 + $0x10] sm:$0xff] %vm568, %v1201
        %1295 = vst.msk [vmem:[%s440 + $0x18] sm:$0xff] %vm568, %v1203
        %1296 = vst.msk [vmem:[%s440 + $0x20] sm:$0xff] %vm568, %v1205
        %1297 = vst.msk [vmem:[%s440 + $0x28] sm:$0xff] %vm568, %v1207
        %1298 = vst.msk [vmem:[%s440 + $0x30] sm:$0xff] %vm568, %v1209
        %1299 = vst.msk [vmem:[%s440 + $0x38] sm:$0xff] %vm568, %v1211
        %1300 = vst.msk [vmem:[%s440 + $0x40] sm:$0xff] %vm568, %v1213
        %1301 = vst.msk [vmem:[%s440 + $0x48] sm:$0xff] %vm568, %v1215
        %1302 = vst.msk [vmem:[%s440 + $0x50] sm:$0xff] %vm568, %v1217
        %1303 = vst.msk [vmem:[%s440 + $0x58] sm:$0xff] %vm568, %v1219
        %1304 = vst.msk [vmem:[%s440 + $0x60] sm:$0xff] %vm568, %v1221
        %1305 = vst.msk [vmem:[%s440 + $0x68] sm:$0xff] %vm568, %v1223
        %1306 = vst.msk [vmem:[%s440 + $0x70] sm:$0xff] %vm568, %v1225
        %1307 = vst.msk [vmem:[%s440 + $0x78] sm:$0xff] %vm568, %v1227
        %1308 = vst.msk [vmem:[%s440 + $0x80] sm:$0xff] %vm568, %v1229
        %1309 = vst.msk [vmem:[%s440 + $0x88] sm:$0xff] %vm568, %v1231
        %1310 = vst.msk [vmem:[%s440 + $0x90] sm:$0xff] %vm568, %v1233
        %1311 = vst.msk [vmem:[%s440 + $0x98] sm:$0xff] %vm568, %v1235
        %1312 = vst.msk [vmem:[%s440 + $0xa0] sm:$0xff] %vm568, %v1237
        %1313 = vst.msk [vmem:[%s440 + $0xa8] sm:$0xff] %vm568, %v1239
        %1314 = vst.msk [vmem:[%s440 + $0xb0] sm:$0xff] %vm568, %v1241
        %1315 = vst.msk [vmem:[%s440 + $0xb8] sm:$0xff] %vm568, %v1243
        %1316 = vst.msk [vmem:[%s440 + $0xc0] sm:$0xff] %vm568, %v1245
        %1317 = vst.msk [vmem:[%s440 + $0xc8] sm:$0xff] %vm568, %v1247
        %1318 = vst.msk [vmem:[%s440 + $0xd0] sm:$0xff] %vm568, %v1249
        %1319 = vst.msk [vmem:[%s440 + $0xd8] sm:$0xff] %vm568, %v1251
        %1320 = vst.msk [vmem:[%s440 + $0xe0] sm:$0xff] %vm568, %v1253
        %1321 = vst.msk [vmem:[%s440 + $0xe8] sm:$0xff] %vm568, %v1255
        %1322 = vst.msk [vmem:[%s440 + $0xf0] sm:$0xff] %vm568, %v1257
        %1323 = vst.msk [vmem:[%s440 + $0xf8] sm:$0xff] %vm568, %v1259
        %v1325 = vsel %vm568, %v940, 0
        %v1328 = vsel %vm568, %v941, 0
        %v1331 = vsel %vm568, %v942, 0
        %v1334 = vsel %vm568, %v943, 0
        %v1337 = vsel %vm568, %v944, 0
        %v1340 = vsel %vm568, %v945, 0
        %v1343 = vsel %vm568, %v946, 0
        %v1346 = vsel %vm568, %v947, 0
        %v1349 = vsel %vm568, %v948, 0
        %v1352 = vsel %vm568, %v949, 0
        %v1355 = vsel %vm568, %v950, 0
        %v1358 = vsel %vm568, %v951, 0
        %v1361 = vsel %vm568, %v952, 0
        %v1364 = vsel %vm568, %v953, 0
        %v1367 = vsel %vm568, %v954, 0
        %v1370 = vsel %vm568, %v955, 0
        %v1373 = vsel %vm568, %v956, 0
        %v1376 = vsel %vm568, %v957, 0
        %v1379 = vsel %vm568, %v958, 0
        %v1382 = vsel %vm568, %v959, 0
        %v1385 = vsel %vm568, %v960, 0
        %v1388 = vsel %vm568, %v961, 0
        %v1391 = vsel %vm568, %v962, 0
        %v1394 = vsel %vm568, %v963, 0
        %v1397 = vsel %vm568, %v964, 0
        %v1400 = vsel %vm568, %v965, 0
        %v1403 = vsel %vm568, %v966, 0
        %v1406 = vsel %vm568, %v967, 0
        %v1409 = vsel %vm568, %v968, 0
        %v1412 = vsel %vm568, %v969, 0
        %v1415 = vsel %vm568, %v970, 0
        %v1418 = vsel %vm568, %v971, 0
        %v1420 = vsel %vm568, %v1197, 0
        %v1422 = vsel %vm568, %v1199, 0
        %v1424 = vsel %vm568, %v1201, 0
        %v1426 = vsel %vm568, %v1203, 0
        %v1428 = vsel %vm568, %v1205, 0
        %v1430 = vsel %vm568, %v1207, 0
        %v1432 = vsel %vm568, %v1209, 0
        %v1434 = vsel %vm568, %v1211, 0
        %v1436 = vsel %vm568, %v1213, 0
        %v1438 = vsel %vm568, %v1215, 0
        %v1440 = vsel %vm568, %v1217, 0
        %v1442 = vsel %vm568, %v1219, 0
        %v1444 = vsel %vm568, %v1221, 0
        %v1446 = vsel %vm568, %v1223, 0
        %v1448 = vsel %vm568, %v1225, 0
        %v1450 = vsel %vm568, %v1227, 0
        %v1452 = vsel %vm568, %v1229, 0
        %v1454 = vsel %vm568, %v1231, 0
        %v1456 = vsel %vm568, %v1233, 0
        %v1458 = vsel %vm568, %v1235, 0
        %v1460 = vsel %vm568, %v1237, 0
        %v1462 = vsel %vm568, %v1239, 0
        %v1464 = vsel %vm568, %v1241, 0
        %v1466 = vsel %vm568, %v1243, 0
        %v1468 = vsel %vm568, %v1245, 0
        %v1470 = vsel %vm568, %v1247, 0
        %v1472 = vsel %vm568, %v1249, 0
        %v1474 = vsel %vm568, %v1251, 0
        %v1476 = vsel %vm568, %v1253, 0
        %v1478 = vsel %vm568, %v1255, 0
        %v1480 = vsel %vm568, %v1257, 0
        %v1482 = vsel %vm568, %v1259, 0
        %1484 = vmatprep.subr.mxu0 0.0
        %1485 = vmatpush1.xpose.msra.mxu0 %v1450
        %1486 = vmatprep.subr.mxu0 0.0
        %1487 = vmatpush1.xpose.msra.mxu0 %v1448
        %1488 = vmatprep.subr.mxu0 0.0
        %1489 = vmatpush1.xpose.msra.mxu0 %v1446
        %1490 = vmatprep.subr.mxu0 0.0
        %1491 = vmatpush1.xpose.msra.mxu0 %v1444
        %1492 = vmatprep.subr.mxu0 0.0
        %1493 = vmatpush1.xpose.msra.mxu0 %v1442
        %1494 = vmatprep.subr.mxu0 0.0
        %1495 = vmatpush1.xpose.msra.mxu0 %v1440
        %1496 = vmatprep.subr.mxu0 0.0
        %1497 = vmatpush1.xpose.msra.mxu0 %v1438
        %1498 = vmatprep.subr.mxu0 0.0
        %1499 = vmatpush1.xpose.msra.mxu0 %v1436
        %1500 = vmatprep.subr.mxu0 0.0
        %1501 = vmatpush1.xpose.msra.mxu0 %v1434
        %1502 = vmatprep.subr.mxu0 0.0
        %1503 = vmatpush1.xpose.msra.mxu0 %v1432
        %1504 = vmatprep.subr.mxu0 0.0
        %1505 = vmatpush1.xpose.msra.mxu0 %v1430
        %1506 = vmatprep.subr.mxu0 0.0
        %1507 = vmatpush1.xpose.msra.mxu0 %v1428
        %1508 = vmatprep.subr.mxu0 0.0
        %1509 = vmatpush1.xpose.msra.mxu0 %v1426
        %1510 = vmatprep.subr.mxu0 0.0
        %1511 = vmatpush1.xpose.msra.mxu0 %v1424
        %1512 = vmatprep.subr.mxu0 0.0
        %1513 = vmatpush1.xpose.msra.mxu0 %v1422
        %1514 = vmatprep.subr.mxu0 0.0
        %1515 = vmatpush1.xpose.msra.mxu0 %v1420
        %1516 = vmatprep.subr.mxu0 0.0
        %1517 = vmatpush2.xpose.msra.mxu0 %v1482
        %1518 = vmatprep.subr.mxu0 0.0
        %1519 = vmatpush2.xpose.msra.mxu0 %v1480
        %1520 = vmatprep.subr.mxu0 0.0
        %1521 = vmatpush2.xpose.msra.mxu0 %v1478
        %1522 = vmatprep.subr.mxu0 0.0
        %1523 = vmatpush2.xpose.msra.mxu0 %v1476
        %1524 = vmatprep.subr.mxu0 0.0
        %1525 = vmatpush2.xpose.msra.mxu0 %v1474
        %1526 = vmatprep.subr.mxu0 0.0
        %1527 = vmatpush2.xpose.msra.mxu0 %v1472
        %1528 = vmatprep.subr.mxu0 0.0
        %1529 = vmatpush2.xpose.msra.mxu0 %v1470
        %1530 = vmatprep.subr.mxu0 0.0
        %1531 = vmatpush2.xpose.msra.mxu0 %v1468
        %1532 = vmatprep.subr.mxu0 0.0
        %1533 = vmatpush2.xpose.msra.mxu0 %v1466
        %1534 = vmatprep.subr.mxu0 0.0
        %1535 = vmatpush2.xpose.msra.mxu0 %v1464
        %1536 = vmatprep.subr.mxu0 0.0
        %1537 = vmatpush2.xpose.msra.mxu0 %v1462
        %1538 = vmatprep.subr.mxu0 0.0
        %1539 = vmatpush2.xpose.msra.mxu0 %v1460
        %1540 = vmatprep.subr.mxu0 0.0
        %1541 = vmatpush2.xpose.msra.mxu0 %v1458
        %1542 = vmatprep.subr.mxu0 0.0
        %1543 = vmatpush2.xpose.msra.mxu0 %v1456
        %1544 = vmatprep.subr.mxu0 0.0
        %1545 = vmatpush2.xpose.msra.mxu0 %v1454
        %1546 = vmatprep.subr.mxu0 0.0
        %1547 = vmatpush2.xpose.msra.mxu0 %v1452
        %1548 = vmatprep.mubr.f32.mxu0 0.0
        %1549 = vmatmul.mubr.f32.gmra.mxu0 %v1325
        %v1550 = vpop.f32.mrf.mxu0
        %v1551 = vadd.f32 %v487, %v1550
        %v1552 = vpop.f32.mrf.mxu0
        %v1553 = vadd.f32 %v488, %v1552
        %1554 = vmatprep.mubr.f32.mxu0 0.0
        %1555 = vmatmul.mubr.f32.gmra.mxu0 %v1328
        %v1556 = vpop.f32.mrf.mxu0
        %v1557 = vadd.f32 %v489, %v1556
        %v1558 = vpop.f32.mrf.mxu0
        %v1559 = vadd.f32 %v490, %v1558
        %1560 = vmatprep.mubr.f32.mxu0 0.0
        %1561 = vmatmul.mubr.f32.gmra.mxu0 %v1331
        %v1562 = vpop.f32.mrf.mxu0
        %v1563 = vadd.f32 %v491, %v1562
        %v1564 = vpop.f32.mrf.mxu0
        %v1565 = vadd.f32 %v492, %v1564
        %1566 = vmatprep.mubr.f32.mxu0 0.0
        %1567 = vmatmul.mubr.f32.gmra.mxu0 %v1334
        %v1568 = vpop.f32.mrf.mxu0
        %v1569 = vadd.f32 %v493, %v1568
        %v1570 = vpop.f32.mrf.mxu0
        %v1571 = vadd.f32 %v494, %v1570
        %1572 = vmatprep.mubr.f32.mxu0 0.0
        %1573 = vmatmul.mubr.f32.gmra.mxu0 %v1337
        %v1574 = vpop.f32.mrf.mxu0
        %v1575 = vadd.f32 %v495, %v1574
        %v1576 = vpop.f32.mrf.mxu0
        %v1577 = vadd.f32 %v496, %v1576
        %1578 = vmatprep.mubr.f32.mxu0 0.0
        %1579 = vmatmul.mubr.f32.gmra.mxu0 %v1340
        %v1580 = vpop.f32.mrf.mxu0
        %v1581 = vadd.f32 %v497, %v1580
        %v1582 = vpop.f32.mrf.mxu0
        %v1583 = vadd.f32 %v498, %v1582
        %1584 = vmatprep.mubr.f32.mxu0 0.0
        %1585 = vmatmul.mubr.f32.gmra.mxu0 %v1343
        %v1586 = vpop.f32.mrf.mxu0
        %v1587 = vadd.f32 %v499, %v1586
        %v1588 = vpop.f32.mrf.mxu0
        %v1589 = vadd.f32 %v500, %v1588
        %1590 = vmatprep.mubr.f32.mxu0 0.0
        %1591 = vmatmul.mubr.f32.gmra.mxu0 %v1346
        %v1592 = vpop.f32.mrf.mxu0
        %v1593 = vadd.f32 %v501, %v1592
        %v1594 = vpop.f32.mrf.mxu0
        %v1595 = vadd.f32 %v502, %v1594
        %1596 = vmatprep.mubr.f32.mxu0 0.0
        %1597 = vmatmul.mubr.f32.gmra.mxu0 %v1349
        %v1598 = vpop.f32.mrf.mxu0
        %v1599 = vadd.f32 %v503, %v1598
        %v1600 = vpop.f32.mrf.mxu0
        %v1601 = vadd.f32 %v504, %v1600
        %1602 = vmatprep.mubr.f32.mxu0 0.0
        %1603 = vmatmul.mubr.f32.gmra.mxu0 %v1352
        %v1604 = vpop.f32.mrf.mxu0
        %v1605 = vadd.f32 %v505, %v1604
        %v1606 = vpop.f32.mrf.mxu0
        %v1607 = vadd.f32 %v506, %v1606
        %1608 = vmatprep.mubr.f32.mxu0 0.0
        %1609 = vmatmul.mubr.f32.gmra.mxu0 %v1355
        %v1610 = vpop.f32.mrf.mxu0
        %v1611 = vadd.f32 %v507, %v1610
        %v1612 = vpop.f32.mrf.mxu0
        %v1613 = vadd.f32 %v508, %v1612
        %1614 = vmatprep.mubr.f32.mxu0 0.0
        %1615 = vmatmul.mubr.f32.gmra.mxu0 %v1358
        %v1616 = vpop.f32.mrf.mxu0
        %v1617 = vadd.f32 %v509, %v1616
        %v1618 = vpop.f32.mrf.mxu0
        %v1619 = vadd.f32 %v510, %v1618
        %1620 = vmatprep.mubr.f32.mxu0 0.0
        %1621 = vmatmul.mubr.f32.gmra.mxu0 %v1361
        %v1622 = vpop.f32.mrf.mxu0
        %v1623 = vadd.f32 %v511, %v1622
        %v1624 = vpop.f32.mrf.mxu0
        %v1625 = vadd.f32 %v512, %v1624
        %1626 = vmatprep.mubr.f32.mxu0 0.0
        %1627 = vmatmul.mubr.f32.gmra.mxu0 %v1364
        %v1628 = vpop.f32.mrf.mxu0
        %v1629 = vadd.f32 %v513, %v1628
        %v1630 = vpop.f32.mrf.mxu0
        %v1631 = vadd.f32 %v514, %v1630
        %1632 = vmatprep.mubr.f32.mxu0 0.0
        %1633 = vmatmul.mubr.f32.gmra.mxu0 %v1367
        %v1634 = vpop.f32.mrf.mxu0
        %v1635 = vadd.f32 %v515, %v1634
        %v1636 = vpop.f32.mrf.mxu0
        %v1637 = vadd.f32 %v516, %v1636
        %1638 = vmatprep.mubr.f32.mxu0 0.0
        %1639 = vmatmul.mubr.f32.gmra.mxu0 %v1370
        %v1640 = vpop.f32.mrf.mxu0
        %v1641 = vadd.f32 %v517, %v1640
        %v1642 = vpop.f32.mrf.mxu0
        %v1643 = vadd.f32 %v518, %v1642
        %1644 = vmatprep.mubr.f32.mxu0 0.0
        %1645 = vmatmul.mubr.f32.gmra.mxu0 %v1373
        %v1646 = vpop.f32.mrf.mxu0
        %v1647 = vadd.f32 %v519, %v1646
        %v1648 = vpop.f32.mrf.mxu0
        %v1649 = vadd.f32 %v520, %v1648
        %1650 = vmatprep.mubr.f32.mxu0 0.0
        %1651 = vmatmul.mubr.f32.gmra.mxu0 %v1376
        %v1652 = vpop.f32.mrf.mxu0
        %v1653 = vadd.f32 %v521, %v1652
        %v1654 = vpop.f32.mrf.mxu0
        %v1655 = vadd.f32 %v522, %v1654
        %1656 = vmatprep.mubr.f32.mxu0 0.0
        %1657 = vmatmul.mubr.f32.gmra.mxu0 %v1379
        %v1658 = vpop.f32.mrf.mxu0
        %v1659 = vadd.f32 %v523, %v1658
        %v1660 = vpop.f32.mrf.mxu0
        %v1661 = vadd.f32 %v524, %v1660
        %1662 = vmatprep.mubr.f32.mxu0 0.0
        %1663 = vmatmul.mubr.f32.gmra.mxu0 %v1382
        %v1664 = vpop.f32.mrf.mxu0
        %v1665 = vadd.f32 %v525, %v1664
        %v1666 = vpop.f32.mrf.mxu0
        %v1667 = vadd.f32 %v526, %v1666
        %1668 = vmatprep.mubr.f32.mxu0 0.0
        %1669 = vmatmul.mubr.f32.gmra.mxu0 %v1385
        %v1670 = vpop.f32.mrf.mxu0
        %v1671 = vadd.f32 %v527, %v1670
        %v1672 = vpop.f32.mrf.mxu0
        %v1673 = vadd.f32 %v528, %v1672
        %1674 = vmatprep.mubr.f32.mxu0 0.0
        %1675 = vmatmul.mubr.f32.gmra.mxu0 %v1388
        %v1676 = vpop.f32.mrf.mxu0
        %v1677 = vadd.f32 %v529, %v1676
        %v1678 = vpop.f32.mrf.mxu0
        %v1679 = vadd.f32 %v530, %v1678
        %1680 = vmatprep.mubr.f32.mxu0 0.0
        %1681 = vmatmul.mubr.f32.gmra.mxu0 %v1391
        %v1682 = vpop.f32.mrf.mxu0
        %v1683 = vadd.f32 %v531, %v1682
        %v1684 = vpop.f32.mrf.mxu0
        %v1685 = vadd.f32 %v532, %v1684
        %1686 = vmatprep.mubr.f32.mxu0 0.0
        %1687 = vmatmul.mubr.f32.gmra.mxu0 %v1394
        %v1688 = vpop.f32.mrf.mxu0
        %v1689 = vadd.f32 %v533, %v1688
        %v1690 = vpop.f32.mrf.mxu0
        %v1691 = vadd.f32 %v534, %v1690
        %1692 = vmatprep.mubr.f32.mxu0 0.0
        %1693 = vmatmul.mubr.f32.gmra.mxu0 %v1397
        %v1694 = vpop.f32.mrf.mxu0
        %v1695 = vadd.f32 %v535, %v1694
        %v1696 = vpop.f32.mrf.mxu0
        %v1697 = vadd.f32 %v536, %v1696
        %1698 = vmatprep.mubr.f32.mxu0 0.0
        %1699 = vmatmul.mubr.f32.gmra.mxu0 %v1400
        %v1700 = vpop.f32.mrf.mxu0
        %v1701 = vadd.f32 %v537, %v1700
        %v1702 = vpop.f32.mrf.mxu0
        %v1703 = vadd.f32 %v538, %v1702
        %1704 = vmatprep.mubr.f32.mxu0 0.0
        %1705 = vmatmul.mubr.f32.gmra.mxu0 %v1403
        %v1706 = vpop.f32.mrf.mxu0
        %v1707 = vadd.f32 %v539, %v1706
        %v1708 = vpop.f32.mrf.mxu0
        %v1709 = vadd.f32 %v540, %v1708
        %1710 = vmatprep.mubr.f32.mxu0 0.0
        %1711 = vmatmul.mubr.f32.gmra.mxu0 %v1406
        %v1712 = vpop.f32.mrf.mxu0
        %v1713 = vadd.f32 %v541, %v1712
        %v1714 = vpop.f32.mrf.mxu0
        %v1715 = vadd.f32 %v542, %v1714
        %1716 = vmatprep.mubr.f32.mxu0 0.0
        %1717 = vmatmul.mubr.f32.gmra.mxu0 %v1409
        %v1718 = vpop.f32.mrf.mxu0
        %v1719 = vadd.f32 %v543, %v1718
        %v1720 = vpop.f32.mrf.mxu0
        %v1721 = vadd.f32 %v544, %v1720
        %1722 = vmatprep.mubr.f32.mxu0 0.0
        %1723 = vmatmul.mubr.f32.gmra.mxu0 %v1412
        %v1724 = vpop.f32.mrf.mxu0
        %v1725 = vadd.f32 %v545, %v1724
        %v1726 = vpop.f32.mrf.mxu0
        %v1727 = vadd.f32 %v546, %v1726
        %1728 = vmatprep.mubr.f32.mxu0 0.0
        %1729 = vmatmul.mubr.f32.gmra.mxu0 %v1415
        %v1730 = vpop.f32.mrf.mxu0
        %v1731 = vadd.f32 %v547, %v1730
        %v1732 = vpop.f32.mrf.mxu0
        %v1733 = vadd.f32 %v548, %v1732
        %1734 = vmatprep.mubr.f32.mxu0 0.0
        %1735 = vmatmul.mubr.f32.gmra.mxu0 %v1418
        %v1736 = vpop.f32.mrf.mxu0
        %v1737 = vadd.f32 %v549, %v1736
        %v1738 = vpop.f32.mrf.mxu0
        %v1739 = vadd.f32 %v550, %v1738
        %1740 = vdwg.mxu0
        %v1741 = vmax.f32 %v1551, %v1553
        %1742 = vmax.xlane.f32.xlu0 %v1741
        %v1743 = vpop.xlane.xlu0 %1742
        %v1744 = vmax.f32 %v1557, %v1559
        %1745 = vmax.xlane.f32.xlu0 %v1744
        %v1746 = vpop.xlane.xlu0 %1745
        %v1747 = vmax.f32 %v1563, %v1565
        %1748 = vmax.xlane.f32.xlu0 %v1747
        %v1749 = vpop.xlane.xlu0 %1748
        %v1750 = vmax.f32 %v1569, %v1571
        %1751 = vmax.xlane.f32.xlu0 %v1750
        %v1752 = vpop.xlane.xlu0 %1751
        %v1753 = vmax.f32 %v1575, %v1577
        %1754 = vmax.xlane.f32.xlu0 %v1753
        %v1755 = vpop.xlane.xlu0 %1754
        %v1756 = vmax.f32 %v1581, %v1583
        %1757 = vmax.xlane.f32.xlu0 %v1756
        %v1758 = vpop.xlane.xlu0 %1757
        %v1759 = vmax.f32 %v1587, %v1589
        %1760 = vmax.xlane.f32.xlu0 %v1759
        %v1761 = vpop.xlane.xlu0 %1760
        %v1762 = vmax.f32 %v1593, %v1595
        %1763 = vmax.xlane.f32.xlu0 %v1762
        %v1764 = vpop.xlane.xlu0 %1763
        %v1765 = vmax.f32 %v1599, %v1601
        %1766 = vmax.xlane.f32.xlu0 %v1765
        %v1767 = vpop.xlane.xlu0 %1766
        %v1768 = vmax.f32 %v1605, %v1607
        %1769 = vmax.xlane.f32.xlu0 %v1768
        %v1770 = vpop.xlane.xlu0 %1769
        %v1771 = vmax.f32 %v1611, %v1613
        %1772 = vmax.xlane.f32.xlu0 %v1771
        %v1773 = vpop.xlane.xlu0 %1772
        %v1774 = vmax.f32 %v1617, %v1619
        %1775 = vmax.xlane.f32.xlu0 %v1774
        %v1776 = vpop.xlane.xlu0 %1775
        %v1777 = vmax.f32 %v1623, %v1625
        %1778 = vmax.xlane.f32.xlu0 %v1777
        %v1779 = vpop.xlane.xlu0 %1778
        %v1780 = vmax.f32 %v1629, %v1631
        %1781 = vmax.xlane.f32.xlu0 %v1780
        %v1782 = vpop.xlane.xlu0 %1781
        %v1783 = vmax.f32 %v1635, %v1637
        %1784 = vmax.xlane.f32.xlu0 %v1783
        %v1785 = vpop.xlane.xlu0 %1784
        %v1786 = vmax.f32 %v1641, %v1643
        %1787 = vmax.xlane.f32.xlu0 %v1786
        %v1788 = vpop.xlane.xlu0 %1787
        %v1789 = vmax.f32 %v1647, %v1649
        %1790 = vmax.xlane.f32.xlu0 %v1789
        %v1791 = vpop.xlane.xlu0 %1790
        %v1792 = vmax.f32 %v1653, %v1655
        %1793 = vmax.xlane.f32.xlu0 %v1792
        %v1794 = vpop.xlane.xlu0 %1793
        %v1795 = vmax.f32 %v1659, %v1661
        %1796 = vmax.xlane.f32.xlu0 %v1795
        %v1797 = vpop.xlane.xlu0 %1796
        %v1798 = vmax.f32 %v1665, %v1667
        %1799 = vmax.xlane.f32.xlu0 %v1798
        %v1800 = vpop.xlane.xlu0 %1799
        %v1801 = vmax.f32 %v1671, %v1673
        %1802 = vmax.xlane.f32.xlu0 %v1801
        %v1803 = vpop.xlane.xlu0 %1802
        %v1804 = vmax.f32 %v1677, %v1679
        %1805 = vmax.xlane.f32.xlu0 %v1804
        %v1806 = vpop.xlane.xlu0 %1805
        %v1807 = vmax.f32 %v1683, %v1685
        %1808 = vmax.xlane.f32.xlu0 %v1807
        %v1809 = vpop.xlane.xlu0 %1808
        %v1810 = vmax.f32 %v1689, %v1691
        %1811 = vmax.xlane.f32.xlu0 %v1810
        %v1812 = vpop.xlane.xlu0 %1811
        %v1813 = vmax.f32 %v1695, %v1697
        %1814 = vmax.xlane.f32.xlu0 %v1813
        %v1815 = vpop.xlane.xlu0 %1814
        %v1816 = vmax.f32 %v1701, %v1703
        %1817 = vmax.xlane.f32.xlu0 %v1816
        %v1818 = vpop.xlane.xlu0 %1817
        %v1819 = vmax.f32 %v1707, %v1709
        %1820 = vmax.xlane.f32.xlu0 %v1819
        %v1821 = vpop.xlane.xlu0 %1820
        %v1822 = vmax.f32 %v1713, %v1715
        %1823 = vmax.xlane.f32.xlu0 %v1822
        %v1824 = vpop.xlane.xlu0 %1823
        %v1825 = vmax.f32 %v1719, %v1721
        %1826 = vmax.xlane.f32.xlu0 %v1825
        %v1827 = vpop.xlane.xlu0 %1826
        %v1828 = vmax.f32 %v1725, %v1727
        %1829 = vmax.xlane.f32.xlu0 %v1828
        %v1830 = vpop.xlane.xlu0 %1829
        %v1831 = vmax.f32 %v1731, %v1733
        %1832 = vmax.xlane.f32.xlu0 %v1831
        %v1833 = vpop.xlane.xlu0 %1832
        %v1834 = vmax.f32 %v1737, %v1739
        %1835 = vmax.xlane.f32.xlu0 %v1834
        %v1836 = vpop.xlane.xlu0 %1835
        %v1837 = vsub.f32 %v1551, %v1743
        %v1838 = vsub.f32 %v1553, %v1743
        %v1839 = vsub.f32 %v1557, %v1746
        %v1840 = vsub.f32 %v1559, %v1746
        %v1841 = vsub.f32 %v1563, %v1749
        %v1842 = vsub.f32 %v1565, %v1749
        %v1843 = vsub.f32 %v1569, %v1752
        %v1844 = vsub.f32 %v1571, %v1752
        %v1845 = vsub.f32 %v1575, %v1755
        %v1846 = vsub.f32 %v1577, %v1755
        %v1847 = vsub.f32 %v1581, %v1758
        %v1848 = vsub.f32 %v1583, %v1758
        %v1849 = vsub.f32 %v1587, %v1761
        %v1850 = vsub.f32 %v1589, %v1761
        %v1851 = vsub.f32 %v1593, %v1764
        %v1852 = vsub.f32 %v1595, %v1764
        %v1853 = vsub.f32 %v1599, %v1767
        %v1854 = vsub.f32 %v1601, %v1767
        %v1855 = vsub.f32 %v1605, %v1770
        %v1856 = vsub.f32 %v1607, %v1770
        %v1857 = vsub.f32 %v1611, %v1773
        %v1858 = vsub.f32 %v1613, %v1773
        %v1859 = vsub.f32 %v1617, %v1776
        %v1860 = vsub.f32 %v1619, %v1776
        %v1861 = vsub.f32 %v1623, %v1779
        %v1862 = vsub.f32 %v1625, %v1779
        %v1863 = vsub.f32 %v1629, %v1782
        %v1864 = vsub.f32 %v1631, %v1782
        %v1865 = vsub.f32 %v1635, %v1785
        %v1866 = vsub.f32 %v1637, %v1785
        %v1867 = vsub.f32 %v1641, %v1788
        %v1868 = vsub.f32 %v1643, %v1788
        %v1869 = vsub.f32 %v1647, %v1791
        %v1870 = vsub.f32 %v1649, %v1791
        %v1871 = vsub.f32 %v1653, %v1794
        %v1872 = vsub.f32 %v1655, %v1794
        %v1873 = vsub.f32 %v1659, %v1797
        %v1874 = vsub.f32 %v1661, %v1797
        %v1875 = vsub.f32 %v1665, %v1800
        %v1876 = vsub.f32 %v1667, %v1800
        %v1877 = vsub.f32 %v1671, %v1803
        %v1878 = vsub.f32 %v1673, %v1803
        %v1879 = vsub.f32 %v1677, %v1806
        %v1880 = vsub.f32 %v1679, %v1806
        %v1881 = vsub.f32 %v1683, %v1809
        %v1882 = vsub.f32 %v1685, %v1809
        %v1883 = vsub.f32 %v1689, %v1812
        %v1884 = vsub.f32 %v1691, %v1812
        %v1885 = vsub.f32 %v1695, %v1815
        %v1886 = vsub.f32 %v1697, %v1815
        %v1887 = vsub.f32 %v1701, %v1818
        %v1888 = vsub.f32 %v1703, %v1818
        %v1889 = vsub.f32 %v1707, %v1821
        %v1890 = vsub.f32 %v1709, %v1821
        %v1891 = vsub.f32 %v1713, %v1824
        %v1892 = vsub.f32 %v1715, %v1824
        %v1893 = vsub.f32 %v1719, %v1827
        %v1894 = vsub.f32 %v1721, %v1827
        %v1895 = vsub.f32 %v1725, %v1830
        %v1896 = vsub.f32 %v1727, %v1830
        %v1897 = vsub.f32 %v1731, %v1833
        %v1898 = vsub.f32 %v1733, %v1833
        %v1899 = vsub.f32 %v1737, %v1836
        %v1900 = vsub.f32 %v1739, %v1836
        %v1901 = vmul.f32 %v1837, 1.442695
        %v1902 = vpow.pop %v1901
        %v1903 = vmul.f32 %v1838, 1.442695
        %v1904 = vpow.pop %v1903
        %v1905 = vmul.f32 %v1839, 1.442695
        %v1906 = vpow.pop %v1905
        %v1907 = vmul.f32 %v1840, 1.442695
        %v1908 = vpow.pop %v1907
        %v1909 = vmul.f32 %v1841, 1.442695
        %v1910 = vpow.pop %v1909
        %v1911 = vmul.f32 %v1842, 1.442695
        %v1912 = vpow.pop %v1911
        %v1913 = vmul.f32 %v1843, 1.442695
        %v1914 = vpow.pop %v1913
        %v1915 = vmul.f32 %v1844, 1.442695
        %v1916 = vpow.pop %v1915
        %v1917 = vmul.f32 %v1845, 1.442695
        %v1918 = vpow.pop %v1917
        %v1919 = vmul.f32 %v1846, 1.442695
        %v1920 = vpow.pop %v1919
        %v1921 = vmul.f32 %v1847, 1.442695
        %v1922 = vpow.pop %v1921
        %v1923 = vmul.f32 %v1848, 1.442695
        %v1924 = vpow.pop %v1923
        %v1925 = vmul.f32 %v1849, 1.442695
        %v1926 = vpow.pop %v1925
        %v1927 = vmul.f32 %v1850, 1.442695
        %v1928 = vpow.pop %v1927
        %v1929 = vmul.f32 %v1851, 1.442695
        %v1930 = vpow.pop %v1929
        %v1931 = vmul.f32 %v1852, 1.442695
        %v1932 = vpow.pop %v1931
        %v1933 = vmul.f32 %v1853, 1.442695
        %v1934 = vpow.pop %v1933
        %v1935 = vmul.f32 %v1854, 1.442695
        %v1936 = vpow.pop %v1935
        %v1937 = vmul.f32 %v1855, 1.442695
        %v1938 = vpow.pop %v1937
        %v1939 = vmul.f32 %v1856, 1.442695
        %v1940 = vpow.pop %v1939
        %v1941 = vmul.f32 %v1857, 1.442695
        %v1942 = vpow.pop %v1941
        %v1943 = vmul.f32 %v1858, 1.442695
        %v1944 = vpow.pop %v1943
        %v1945 = vmul.f32 %v1859, 1.442695
        %v1946 = vpow.pop %v1945
        %v1947 = vmul.f32 %v1860, 1.442695
        %v1948 = vpow.pop %v1947
        %v1949 = vmul.f32 %v1861, 1.442695
        %v1950 = vpow.pop %v1949
        %v1951 = vmul.f32 %v1862, 1.442695
        %v1952 = vpow.pop %v1951
        %v1953 = vmul.f32 %v1863, 1.442695
        %v1954 = vpow.pop %v1953
        %v1955 = vmul.f32 %v1864, 1.442695
        %v1956 = vpow.pop %v1955
        %v1957 = vmul.f32 %v1865, 1.442695
        %v1958 = vpow.pop %v1957
        %v1959 = vmul.f32 %v1866, 1.442695
        %v1960 = vpow.pop %v1959
        %v1961 = vmul.f32 %v1867, 1.442695
        %v1962 = vpow.pop %v1961
        %v1963 = vmul.f32 %v1868, 1.442695
        %v1964 = vpow.pop %v1963
        %v1965 = vmul.f32 %v1869, 1.442695
        %v1966 = vpow.pop %v1965
        %v1967 = vmul.f32 %v1870, 1.442695
        %v1968 = vpow.pop %v1967
        %v1969 = vmul.f32 %v1871, 1.442695
        %v1970 = vpow.pop %v1969
        %v1971 = vmul.f32 %v1872, 1.442695
        %v1972 = vpow.pop %v1971
        %v1973 = vmul.f32 %v1873, 1.442695
        %v1974 = vpow.pop %v1973
        %v1975 = vmul.f32 %v1874, 1.442695
        %v1976 = vpow.pop %v1975
        %v1977 = vmul.f32 %v1875, 1.442695
        %v1978 = vpow.pop %v1977
        %v1979 = vmul.f32 %v1876, 1.442695
        %v1980 = vpow.pop %v1979
        %v1981 = vmul.f32 %v1877, 1.442695
        %v1982 = vpow.pop %v1981
        %v1983 = vmul.f32 %v1878, 1.442695
        %v1984 = vpow.pop %v1983
        %v1985 = vmul.f32 %v1879, 1.442695
        %v1986 = vpow.pop %v1985
        %v1987 = vmul.f32 %v1880, 1.442695
        %v1988 = vpow.pop %v1987
        %v1989 = vmul.f32 %v1881, 1.442695
        %v1990 = vpow.pop %v1989
        %v1991 = vmul.f32 %v1882, 1.442695
        %v1992 = vpow.pop %v1991
        %v1993 = vmul.f32 %v1883, 1.442695
        %v1994 = vpow.pop %v1993
        %v1995 = vmul.f32 %v1884, 1.442695
        %v1996 = vpow.pop %v1995
        %v1997 = vmul.f32 %v1885, 1.442695
        %v1998 = vpow.pop %v1997
        %v1999 = vmul.f32 %v1886, 1.442695
        %v2000 = vpow.pop %v1999
        %v2001 = vmul.f32 %v1887, 1.442695
        %v2002 = vpow.pop %v2001
        %v2003 = vmul.f32 %v1888, 1.442695
        %v2004 = vpow.pop %v2003
        %v2005 = vmul.f32 %v1889, 1.442695
        %v2006 = vpow.pop %v2005
        %v2007 = vmul.f32 %v1890, 1.442695
        %v2008 = vpow.pop %v2007
        %v2009 = vmul.f32 %v1891, 1.442695
        %v2010 = vpow.pop %v2009
        %v2011 = vmul.f32 %v1892, 1.442695
        %v2012 = vpow.pop %v2011
        %v2013 = vmul.f32 %v1893, 1.442695
        %v2014 = vpow.pop %v2013
        %v2015 = vmul.f32 %v1894, 1.442695
        %v2016 = vpow.pop %v2015
        %v2017 = vmul.f32 %v1895, 1.442695
        %v2018 = vpow.pop %v2017
        %v2019 = vmul.f32 %v1896, 1.442695
        %v2020 = vpow.pop %v2019
        %v2021 = vmul.f32 %v1897, 1.442695
        %v2022 = vpow.pop %v2021
        %v2023 = vmul.f32 %v1898, 1.442695
        %v2024 = vpow.pop %v2023
        %v2025 = vmul.f32 %v1899, 1.442695
        %v2026 = vpow.pop %v2025
        %v2027 = vmul.f32 %v1900, 1.442695
        %v2028 = vpow.pop %v2027
        %v2029 = vadd.f32 %v1902, %v1904
        %2030 = vadd.xlane.f32.xlu0 %v2029
        %v2031 = vpop.xlane.xlu0 %2030
        %v2032 = vadd.f32 %v1906, %v1908
        %2033 = vadd.xlane.f32.xlu0 %v2032
        %v2034 = vpop.xlane.xlu0 %2033
        %v2035 = vadd.f32 %v1910, %v1912
        %2036 = vadd.xlane.f32.xlu0 %v2035
        %v2037 = vpop.xlane.xlu0 %2036
        %v2038 = vadd.f32 %v1914, %v1916
        %2039 = vadd.xlane.f32.xlu0 %v2038
        %v2040 = vpop.xlane.xlu0 %2039
        %v2041 = vadd.f32 %v1918, %v1920
        %2042 = vadd.xlane.f32.xlu0 %v2041
        %v2043 = vpop.xlane.xlu0 %2042
        %v2044 = vadd.f32 %v1922, %v1924
        %2045 = vadd.xlane.f32.xlu0 %v2044
        %v2046 = vpop.xlane.xlu0 %2045
        %v2047 = vadd.f32 %v1926, %v1928
        %2048 = vadd.xlane.f32.xlu0 %v2047
        %v2049 = vpop.xlane.xlu0 %2048
        %v2050 = vadd.f32 %v1930, %v1932
        %2051 = vadd.xlane.f32.xlu0 %v2050
        %v2052 = vpop.xlane.xlu0 %2051
        %v2053 = vadd.f32 %v1934, %v1936
        %2054 = vadd.xlane.f32.xlu0 %v2053
        %v2055 = vpop.xlane.xlu0 %2054
        %v2056 = vadd.f32 %v1938, %v1940
        %2057 = vadd.xlane.f32.xlu0 %v2056
        %v2058 = vpop.xlane.xlu0 %2057
        %v2059 = vadd.f32 %v1942, %v1944
        %2060 = vadd.xlane.f32.xlu0 %v2059
        %v2061 = vpop.xlane.xlu0 %2060
        %v2062 = vadd.f32 %v1946, %v1948
        %2063 = vadd.xlane.f32.xlu0 %v2062
        %v2064 = vpop.xlane.xlu0 %2063
        %v2065 = vadd.f32 %v1950, %v1952
        %2066 = vadd.xlane.f32.xlu0 %v2065
        %v2067 = vpop.xlane.xlu0 %2066
        %v2068 = vadd.f32 %v1954, %v1956
        %2069 = vadd.xlane.f32.xlu0 %v2068
        %v2070 = vpop.xlane.xlu0 %2069
        %v2071 = vadd.f32 %v1958, %v1960
        %2072 = vadd.xlane.f32.xlu0 %v2071
        %v2073 = vpop.xlane.xlu0 %2072
        %v2074 = vadd.f32 %v1962, %v1964
        %2075 = vadd.xlane.f32.xlu0 %v2074
        %v2076 = vpop.xlane.xlu0 %2075
        %v2077 = vadd.f32 %v1966, %v1968
        %2078 = vadd.xlane.f32.xlu0 %v2077
        %v2079 = vpop.xlane.xlu0 %2078
        %v2080 = vadd.f32 %v1970, %v1972
        %2081 = vadd.xlane.f32.xlu0 %v2080
        %v2082 = vpop.xlane.xlu0 %2081
        %v2083 = vadd.f32 %v1974, %v1976
        %2084 = vadd.xlane.f32.xlu0 %v2083
        %v2085 = vpop.xlane.xlu0 %2084
        %v2086 = vadd.f32 %v1978, %v1980
        %2087 = vadd.xlane.f32.xlu0 %v2086
        %v2088 = vpop.xlane.xlu0 %2087
        %v2089 = vadd.f32 %v1982, %v1984
        %2090 = vadd.xlane.f32.xlu0 %v2089
        %v2091 = vpop.xlane.xlu0 %2090
        %v2092 = vadd.f32 %v1986, %v1988
        %2093 = vadd.xlane.f32.xlu0 %v2092
        %v2094 = vpop.xlane.xlu0 %2093
        %v2095 = vadd.f32 %v1990, %v1992
        %2096 = vadd.xlane.f32.xlu0 %v2095
        %v2097 = vpop.xlane.xlu0 %2096
        %v2098 = vadd.f32 %v1994, %v1996
        %2099 = vadd.xlane.f32.xlu0 %v2098
        %v2100 = vpop.xlane.xlu0 %2099
        %v2101 = vadd.f32 %v1998, %v2000
        %2102 = vadd.xlane.f32.xlu0 %v2101
        %v2103 = vpop.xlane.xlu0 %2102
        %v2104 = vadd.f32 %v2002, %v2004
        %2105 = vadd.xlane.f32.xlu0 %v2104
        %v2106 = vpop.xlane.xlu0 %2105
        %v2107 = vadd.f32 %v2006, %v2008
        %2108 = vadd.xlane.f32.xlu0 %v2107
        %v2109 = vpop.xlane.xlu0 %2108
        %v2110 = vadd.f32 %v2010, %v2012
        %2111 = vadd.xlane.f32.xlu0 %v2110
        %v2112 = vpop.xlane.xlu0 %2111
        %v2113 = vadd.f32 %v2014, %v2016
        %2114 = vadd.xlane.f32.xlu0 %v2113
        %v2115 = vpop.xlane.xlu0 %2114
        %v2116 = vadd.f32 %v2018, %v2020
        %2117 = vadd.xlane.f32.xlu0 %v2116
        %v2118 = vpop.xlane.xlu0 %2117
        %v2119 = vadd.f32 %v2022, %v2024
        %2120 = vadd.xlane.f32.xlu0 %v2119
        %v2121 = vpop.xlane.xlu0 %2120
        %v2122 = vadd.f32 %v2026, %v2028
        %2123 = vadd.xlane.f32.xlu0 %v2122
        %v2124 = vpop.xlane.xlu0 %2123
        %v2125 = vrcp.pop %v2031
        %v2126 = vmul.f32 %v1902, %v2125
        %v2127 = vmul.f32 %v1904, %v2125
        %v2128 = vrcp.pop %v2034
        %v2129 = vmul.f32 %v1906, %v2128
        %v2130 = vmul.f32 %v1908, %v2128
        %v2131 = vrcp.pop %v2037
        %v2132 = vmul.f32 %v1910, %v2131
        %v2133 = vmul.f32 %v1912, %v2131
        %v2134 = vrcp.pop %v2040
        %v2135 = vmul.f32 %v1914, %v2134
        %v2136 = vmul.f32 %v1916, %v2134
        %v2137 = vrcp.pop %v2043
        %v2138 = vmul.f32 %v1918, %v2137
        %v2139 = vmul.f32 %v1920, %v2137
        %v2140 = vrcp.pop %v2046
        %v2141 = vmul.f32 %v1922, %v2140
        %v2142 = vmul.f32 %v1924, %v2140
        %v2143 = vrcp.pop %v2049
        %v2144 = vmul.f32 %v1926, %v2143
        %v2145 = vmul.f32 %v1928, %v2143
        %v2146 = vrcp.pop %v2052
        %v2147 = vmul.f32 %v1930, %v2146
        %v2148 = vmul.f32 %v1932, %v2146
        %v2149 = vrcp.pop %v2055
        %v2150 = vmul.f32 %v1934, %v2149
        %v2151 = vmul.f32 %v1936, %v2149
        %v2152 = vrcp.pop %v2058
        %v2153 = vmul.f32 %v1938, %v2152
        %v2154 = vmul.f32 %v1940, %v2152
        %v2155 = vrcp.pop %v2061
        %v2156 = vmul.f32 %v1942, %v2155
        %v2157 = vmul.f32 %v1944, %v2155
        %v2158 = vrcp.pop %v2064
        %v2159 = vmul.f32 %v1946, %v2158
        %v2160 = vmul.f32 %v1948, %v2158
        %v2161 = vrcp.pop %v2067
        %v2162 = vmul.f32 %v1950, %v2161
        %v2163 = vmul.f32 %v1952, %v2161
        %v2164 = vrcp.pop %v2070
        %v2165 = vmul.f32 %v1954, %v2164
        %v2166 = vmul.f32 %v1956, %v2164
        %v2167 = vrcp.pop %v2073
        %v2168 = vmul.f32 %v1958, %v2167
        %v2169 = vmul.f32 %v1960, %v2167
        %v2170 = vrcp.pop %v2076
        %v2171 = vmul.f32 %v1962, %v2170
        %v2172 = vmul.f32 %v1964, %v2170
        %v2173 = vrcp.pop %v2079
        %v2174 = vmul.f32 %v1966, %v2173
        %v2175 = vmul.f32 %v1968, %v2173
        %v2176 = vrcp.pop %v2082
        %v2177 = vmul.f32 %v1970, %v2176
        %v2178 = vmul.f32 %v1972, %v2176
        %v2179 = vrcp.pop %v2085
        %v2180 = vmul.f32 %v1974, %v2179
        %v2181 = vmul.f32 %v1976, %v2179
        %v2182 = vrcp.pop %v2088
        %v2183 = vmul.f32 %v1978, %v2182
        %v2184 = vmul.f32 %v1980, %v2182
        %v2185 = vrcp.pop %v2091
        %v2186 = vmul.f32 %v1982, %v2185
        %v2187 = vmul.f32 %v1984, %v2185
        %v2188 = vrcp.pop %v2094
        %v2189 = vmul.f32 %v1986, %v2188
        %v2190 = vmul.f32 %v1988, %v2188
        %v2191 = vrcp.pop %v2097
        %v2192 = vmul.f32 %v1990, %v2191
        %v2193 = vmul.f32 %v1992, %v2191
        %v2194 = vrcp.pop %v2100
        %v2195 = vmul.f32 %v1994, %v2194
        %v2196 = vmul.f32 %v1996, %v2194
        %v2197 = vrcp.pop %v2103
        %v2198 = vmul.f32 %v1998, %v2197
        %v2199 = vmul.f32 %v2000, %v2197
        %v2200 = vrcp.pop %v2106
        %v2201 = vmul.f32 %v2002, %v2200
        %v2202 = vmul.f32 %v2004, %v2200
        %v2203 = vrcp.pop %v2109
        %v2204 = vmul.f32 %v2006, %v2203
        %v2205 = vmul.f32 %v2008, %v2203
        %v2206 = vrcp.pop %v2112
        %v2207 = vmul.f32 %v2010, %v2206
        %v2208 = vmul.f32 %v2012, %v2206
        %v2209 = vrcp.pop %v2115
        %v2210 = vmul.f32 %v2014, %v2209
        %v2211 = vmul.f32 %v2016, %v2209
        %v2212 = vrcp.pop %v2118
        %v2213 = vmul.f32 %v2018, %v2212
        %v2214 = vmul.f32 %v2020, %v2212
        %v2215 = vrcp.pop %v2121
        %v2216 = vmul.f32 %v2022, %v2215
        %v2217 = vmul.f32 %v2024, %v2215
        %v2218 = vrcp.pop %v2124
        %v2219 = vmul.f32 %v2026, %v2218
        %v2220 = vmul.f32 %v2028, %v2218
        %2221 = vst [vmem:[%s419] sm:$0xff] %v2126
        %2222 = vst [vmem:[%s419 + $0x8] sm:$0xff] %v2127
        %2223 = vst [vmem:[%s419 + $0x10] sm:$0xff] %v2129
        %2224 = vst [vmem:[%s419 + $0x18] sm:$0xff] %v2130
        %2225 = vst [vmem:[%s419 + $0x20] sm:$0xff] %v2132
        %2226 = vst [vmem:[%s419 + $0x28] sm:$0xff] %v2133
        %2227 = vst [vmem:[%s419 + $0x30] sm:$0xff] %v2135
        %2228 = vst [vmem:[%s419 + $0x38] sm:$0xff] %v2136
        %2229 = vst [vmem:[%s419 + $0x40] sm:$0xff] %v2138
        %2230 = vst [vmem:[%s419 + $0x48] sm:$0xff] %v2139
        %2231 = vst [vmem:[%s419 + $0x50] sm:$0xff] %v2141
        %2232 = vst [vmem:[%s419 + $0x58] sm:$0xff] %v2142
        %2233 = vst [vmem:[%s419 + $0x60] sm:$0xff] %v2144
        %2234 = vst [vmem:[%s419 + $0x68] sm:$0xff] %v2145
        %2235 = vst [vmem:[%s419 + $0x70] sm:$0xff] %v2147
        %2236 = vst [vmem:[%s419 + $0x78] sm:$0xff] %v2148
        %2237 = vst [vmem:[%s419 + $0x80] sm:$0xff] %v2150
        %2238 = vst [vmem:[%s419 + $0x88] sm:$0xff] %v2151
        %2239 = vst [vmem:[%s419 + $0x90] sm:$0xff] %v2153
        %2240 = vst [vmem:[%s419 + $0x98] sm:$0xff] %v2154
        %2241 = vst [vmem:[%s419 + $0xa0] sm:$0xff] %v2156
        %2242 = vst [vmem:[%s419 + $0xa8] sm:$0xff] %v2157
        %2243 = vst [vmem:[%s419 + $0xb0] sm:$0xff] %v2159
        %2244 = vst [vmem:[%s419 + $0xb8] sm:$0xff] %v2160
        %2245 = vst [vmem:[%s419 + $0xc0] sm:$0xff] %v2162
        %2246 = vst [vmem:[%s419 + $0xc8] sm:$0xff] %v2163
        %2247 = vst [vmem:[%s419 + $0xd0] sm:$0xff] %v2165
        %2248 = vst [vmem:[%s419 + $0xd8] sm:$0xff] %v2166
        %2249 = vst [vmem:[%s419 + $0xe0] sm:$0xff] %v2168
        %2250 = vst [vmem:[%s419 + $0xe8] sm:$0xff] %v2169
        %2251 = vst [vmem:[%s419 + $0xf0] sm:$0xff] %v2171
        %2252 = vst [vmem:[%s419 + $0xf8] sm:$0xff] %v2172
        %2253 = vst [vmem:[%s419 + $0x100] sm:$0xff] %v2174
        %2254 = vst [vmem:[%s419 + $0x108] sm:$0xff] %v2175
        %2255 = vst [vmem:[%s419 + $0x110] sm:$0xff] %v2177
        %2256 = vst [vmem:[%s419 + $0x118] sm:$0xff] %v2178
        %2257 = vst [vmem:[%s419 + $0x120] sm:$0xff] %v2180
        %2258 = vst [vmem:[%s419 + $0x128] sm:$0xff] %v2181
        %2259 = vst [vmem:[%s419 + $0x130] sm:$0xff] %v2183
        %2260 = vst [vmem:[%s419 + $0x138] sm:$0xff] %v2184
        %2261 = vst [vmem:[%s419 + $0x140] sm:$0xff] %v2186
        %2262 = vst [vmem:[%s419 + $0x148] sm:$0xff] %v2187
        %2263 = vst [vmem:[%s419 + $0x150] sm:$0xff] %v2189
        %2264 = vst [vmem:[%s419 + $0x158] sm:$0xff] %v2190
        %2265 = vst [vmem:[%s419 + $0x160] sm:$0xff] %v2192
        %2266 = vst [vmem:[%s419 + $0x168] sm:$0xff] %v2193
        %2267 = vst [vmem:[%s419 + $0x170] sm:$0xff] %v2195
        %2268 = vst [vmem:[%s419 + $0x178] sm:$0xff] %v2196
        %2269 = vst [vmem:[%s419 + $0x180] sm:$0xff] %v2198
        %2270 = vst [vmem:[%s419 + $0x188] sm:$0xff] %v2199
        %2271 = vst [vmem:[%s419 + $0x190] sm:$0xff] %v2201
        %2272 = vst [vmem:[%s419 + $0x198] sm:$0xff] %v2202
        %2273 = vst [vmem:[%s419 + $0x1a0] sm:$0xff] %v2204
        %2274 = vst [vmem:[%s419 + $0x1a8] sm:$0xff] %v2205
        %2275 = vst [vmem:[%s419 + $0x1b0] sm:$0xff] %v2207
        %2276 = vst [vmem:[%s419 + $0x1b8] sm:$0xff] %v2208
        %2277 = vst [vmem:[%s419 + $0x1c0] sm:$0xff] %v2210
        %2278 = vst [vmem:[%s419 + $0x1c8] sm:$0xff] %v2211
        %2279 = vst [vmem:[%s419 + $0x1d0] sm:$0xff] %v2213
        %2280 = vst [vmem:[%s419 + $0x1d8] sm:$0xff] %v2214
        %2281 = vst [vmem:[%s419 + $0x1e0] sm:$0xff] %v2216
        %2282 = vst [vmem:[%s419 + $0x1e8] sm:$0xff] %v2217
        %2283 = vst [vmem:[%s419 + $0x1f0] sm:$0xff] %v2219
        %2284 = vst [vmem:[%s419 + $0x1f8] sm:$0xff] %v2220
        %v2285 = vadd.f32 %v2126, %v2127
        %2286 = vadd.xlane.f32.xlu0 %v2285
        %v2287 = vpop.xlane.xlu0 %2286
        %v2288 = vadd.f32 %v2129, %v2130
        %2289 = vadd.xlane.f32.xlu0 %v2288
        %v2290 = vpop.xlane.xlu0 %2289
        %v2291 = vadd.f32 %v2132, %v2133
        %2292 = vadd.xlane.f32.xlu0 %v2291
        %v2293 = vpop.xlane.xlu0 %2292
        %v2294 = vadd.f32 %v2135, %v2136
        %2295 = vadd.xlane.f32.xlu0 %v2294
        %v2296 = vpop.xlane.xlu0 %2295
        %v2297 = vadd.f32 %v2138, %v2139
        %2298 = vadd.xlane.f32.xlu0 %v2297
        %v2299 = vpop.xlane.xlu0 %2298
        %v2300 = vadd.f32 %v2141, %v2142
        %2301 = vadd.xlane.f32.xlu0 %v2300
        %v2302 = vpop.xlane.xlu0 %2301
        %v2303 = vadd.f32 %v2144, %v2145
        %2304 = vadd.xlane.f32.xlu0 %v2303
        %v2305 = vpop.xlane.xlu0 %2304
        %v2306 = vadd.f32 %v2147, %v2148
        %2307 = vadd.xlane.f32.xlu0 %v2306
        %v2308 = vpop.xlane.xlu0 %2307
        %v2309 = vadd.f32 %v2150, %v2151
        %2310 = vadd.xlane.f32.xlu0 %v2309
        %v2311 = vpop.xlane.xlu0 %2310
        %v2312 = vadd.f32 %v2153, %v2154
        %2313 = vadd.xlane.f32.xlu0 %v2312
        %v2314 = vpop.xlane.xlu0 %2313
        %v2315 = vadd.f32 %v2156, %v2157
        %2316 = vadd.xlane.f32.xlu0 %v2315
        %v2317 = vpop.xlane.xlu0 %2316
        %v2318 = vadd.f32 %v2159, %v2160
        %2319 = vadd.xlane.f32.xlu0 %v2318
        %v2320 = vpop.xlane.xlu0 %2319
        %v2321 = vadd.f32 %v2162, %v2163
        %2322 = vadd.xlane.f32.xlu0 %v2321
        %v2323 = vpop.xlane.xlu0 %2322
        %v2324 = vadd.f32 %v2165, %v2166
        %2325 = vadd.xlane.f32.xlu0 %v2324
        %v2326 = vpop.xlane.xlu0 %2325
        %v2327 = vadd.f32 %v2168, %v2169
        %2328 = vadd.xlane.f32.xlu0 %v2327
        %v2329 = vpop.xlane.xlu0 %2328
        %v2330 = vadd.f32 %v2171, %v2172
        %2331 = vadd.xlane.f32.xlu0 %v2330
        %v2332 = vpop.xlane.xlu0 %2331
        %v2333 = vadd.f32 %v2174, %v2175
        %2334 = vadd.xlane.f32.xlu0 %v2333
        %v2335 = vpop.xlane.xlu0 %2334
        %v2336 = vadd.f32 %v2177, %v2178
        %2337 = vadd.xlane.f32.xlu0 %v2336
        %v2338 = vpop.xlane.xlu0 %2337
        %v2339 = vadd.f32 %v2180, %v2181
        %2340 = vadd.xlane.f32.xlu0 %v2339
        %v2341 = vpop.xlane.xlu0 %2340
        %v2342 = vadd.f32 %v2183, %v2184
        %2343 = vadd.xlane.f32.xlu0 %v2342
        %v2344 = vpop.xlane.xlu0 %2343
        %v2345 = vadd.f32 %v2186, %v2187
        %2346 = vadd.xlane.f32.xlu0 %v2345
        %v2347 = vpop.xlane.xlu0 %2346
        %v2348 = vadd.f32 %v2189, %v2190
        %2349 = vadd.xlane.f32.xlu0 %v2348
        %v2350 = vpop.xlane.xlu0 %2349
        %v2351 = vadd.f32 %v2192, %v2193
        %2352 = vadd.xlane.f32.xlu0 %v2351
        %v2353 = vpop.xlane.xlu0 %2352
        %v2354 = vadd.f32 %v2195, %v2196
        %2355 = vadd.xlane.f32.xlu0 %v2354
        %v2356 = vpop.xlane.xlu0 %2355
        %v2357 = vadd.f32 %v2198, %v2199
        %2358 = vadd.xlane.f32.xlu0 %v2357
        %v2359 = vpop.xlane.xlu0 %2358
        %v2360 = vadd.f32 %v2201, %v2202
        %2361 = vadd.xlane.f32.xlu0 %v2360
        %v2362 = vpop.xlane.xlu0 %2361
        %v2363 = vadd.f32 %v2204, %v2205
        %2364 = vadd.xlane.f32.xlu0 %v2363
        %v2365 = vpop.xlane.xlu0 %2364
        %v2366 = vadd.f32 %v2207, %v2208
        %2367 = vadd.xlane.f32.xlu0 %v2366
        %v2368 = vpop.xlane.xlu0 %2367
        %v2369 = vadd.f32 %v2210, %v2211
        %2370 = vadd.xlane.f32.xlu0 %v2369
        %v2371 = vpop.xlane.xlu0 %2370
        %v2372 = vadd.f32 %v2213, %v2214
        %2373 = vadd.xlane.f32.xlu0 %v2372
        %v2374 = vpop.xlane.xlu0 %2373
        %v2375 = vadd.f32 %v2216, %v2217
        %2376 = vadd.xlane.f32.xlu0 %v2375
        %v2377 = vpop.xlane.xlu0 %2376
        %v2378 = vadd.f32 %v2219, %v2220
        %2379 = vadd.xlane.f32.xlu0 %v2378
        %v2380 = vpop.xlane.xlu0 %2379
        %v2381 = vmax.f32 %v2287, %v2299
        %v2382 = vmax.f32 %v2290, %v2302
        %v2383 = vmax.f32 %v2293, %v2305
        %v2384 = vmax.f32 %v2296, %v2308
        %v2385 = vmax.f32 %v2381, %v2311
        %v2386 = vmax.f32 %v2382, %v2314
        %v2387 = vmax.f32 %v2383, %v2317
        %v2388 = vmax.f32 %v2384, %v2320
        %v2389 = vmax.f32 %v2385, %v2323
        %v2390 = vmax.f32 %v2386, %v2326
        %v2391 = vmax.f32 %v2387, %v2329
        %v2392 = vmax.f32 %v2388, %v2332
        %v2393 = vmax.f32 %v2389, %v2335
        %v2394 = vmax.f32 %v2390, %v2338
        %v2395 = vmax.f32 %v2391, %v2341
        %v2396 = vmax.f32 %v2392, %v2344
        %v2397 = vmax.f32 %v2393, %v2347
        %v2398 = vmax.f32 %v2394, %v2350
        %v2399 = vmax.f32 %v2395, %v2353
        %v2400 = vmax.f32 %v2396, %v2356
        %v2401 = vmax.f32 %v2397, %v2359
        %v2402 = vmax.f32 %v2398, %v2362
        %v2403 = vmax.f32 %v2399, %v2365
        %v2404 = vmax.f32 %v2400, %v2368
        %v2405 = vmax.f32 %v2401, %v2371
        %v2406 = vmax.f32 %v2402, %v2374
        %v2407 = vmax.f32 %v2403, %v2377
        %v2408 = vmax.f32 %v2404, %v2380
        %v2409 = vmax.f32 %v2405, %v2406
        %v2410 = vmax.f32 %v2407, %v2408
        %v2411 = vmax.f32 %v2409, %v2410
        %v2412 = vrot.slane %v2411, 4
        %v2413 = vmax.f32 %v2411, %v2412
        %v2414 = vrot.slane %v2413, 2
        %v2415 = vmax.f32 %v2413, %v2414
        %v2416 = vrot.slane %v2415, 1
        %v2417 = vmax.f32 %v2415, %v2416
        %s2418 = vtos %v2417
        %v2419 = vstv %s2418
        %v2420 = vadd.f32 %v2126, %v2129
        %v2421 = vadd.f32 %v2420, %v2132
        %v2422 = vadd.f32 %v2421, %v2135
        %v2423 = vadd.f32 %v2422, %v2138
        %v2424 = vadd.f32 %v2423, %v2141
        %v2425 = vadd.f32 %v2424, %v2144
        %v2426 = vadd.f32 %v2425, %v2147
        %v2427 = vadd.f32 %v2426, %v2150
        %v2428 = vadd.f32 %v2427, %v2153
        %v2429 = vadd.f32 %v2428, %v2156
        %v2430 = vadd.f32 %v2429, %v2159
        %v2431 = vadd.f32 %v2430, %v2162
        %v2432 = vadd.f32 %v2431, %v2165
        %v2433 = vadd.f32 %v2432, %v2168
        %v2434 = vadd.f32 %v2433, %v2171
        %v2435 = vadd.f32 %v2434, %v2174
        %v2436 = vadd.f32 %v2435, %v2177
        %v2437 = vadd.f32 %v2436, %v2180
        %v2438 = vadd.f32 %v2437, %v2183
        %v2439 = vadd.f32 %v2438, %v2186
        %v2440 = vadd.f32 %v2439, %v2189
        %v2441 = vadd.f32 %v2440, %v2192
        %v2442 = vadd.f32 %v2441, %v2195
        %v2443 = vadd.f32 %v2442, %v2198
        %v2444 = vadd.f32 %v2443, %v2201
        %v2445 = vadd.f32 %v2444, %v2204
        %v2446 = vadd.f32 %v2445, %v2207
        %v2447 = vadd.f32 %v2446, %v2210
        %v2448 = vadd.f32 %v2447, %v2213
        %v2449 = vadd.f32 %v2448, %v2216
        %v2450 = vadd.f32 %v2449, %v2219
        %v2451 = vrot.slane %v2450, 4
        %v2452 = vadd.f32 %v2450, %v2451
        %v2453 = vrot.slane %v2452, 2
        %v2454 = vadd.f32 %v2452, %v2453
        %v2455 = vrot.slane %v2454, 1
        %v2456 = vadd.f32 %v2454, %v2455
        %v2457 = vadd.f32 %v2127, %v2130
        %v2458 = vadd.f32 %v2457, %v2133
        %v2459 = vadd.f32 %v2458, %v2136
        %v2460 = vadd.f32 %v2459, %v2139
        %v2461 = vadd.f32 %v2460, %v2142
        %v2462 = vadd.f32 %v2461, %v2145
        %v2463 = vadd.f32 %v2462, %v2148
        %v2464 = vadd.f32 %v2463, %v2151
        %v2465 = vadd.f32 %v2464, %v2154
        %v2466 = vadd.f32 %v2465, %v2157
        %v2467 = vadd.f32 %v2466, %v2160
        %v2468 = vadd.f32 %v2467, %v2163
        %v2469 = vadd.f32 %v2468, %v2166
        %v2470 = vadd.f32 %v2469, %v2169
        %v2471 = vadd.f32 %v2470, %v2172
        %v2472 = vadd.f32 %v2471, %v2175
        %v2473 = vadd.f32 %v2472, %v2178
        %v2474 = vadd.f32 %v2473, %v2181
        %v2475 = vadd.f32 %v2474, %v2184
        %v2476 = vadd.f32 %v2475, %v2187
        %v2477 = vadd.f32 %v2476, %v2190
        %v2478 = vadd.f32 %v2477, %v2193
        %v2479 = vadd.f32 %v2478, %v2196
        %v2480 = vadd.f32 %v2479, %v2199
        %v2481 = vadd.f32 %v2480, %v2202
        %v2482 = vadd.f32 %v2481, %v2205
        %v2483 = vadd.f32 %v2482, %v2208
        %v2484 = vadd.f32 %v2483, %v2211
        %v2485 = vadd.f32 %v2484, %v2214
        %v2486 = vadd.f32 %v2485, %v2217
        %v2487 = vadd.f32 %v2486, %v2220
        %v2488 = vrot.slane %v2487, 4
        %v2489 = vadd.f32 %v2487, %v2488
        %v2490 = vrot.slane %v2489, 2
        %v2491 = vadd.f32 %v2489, %v2490
        %v2492 = vrot.slane %v2491, 1
        %v2493 = vadd.f32 %v2491, %v2492
        %v2494 = vmax.f32 %v2456, %v2493
        %2495 = vmax.xlane.f32.xlu0 %v2494
        %v2496 = vpop.xlane.xlu0 %2495
        %s2497 = vtos %v2496
        %v2498 = vstv %s2497
        %vm2499 = vcmask 7168
        %v2500 = vsel %vm2499, %v2419, %v2498
        %vm2501 = vcmask 8192
        %2502 = vst.msk [vmem:[%s425] sm:$0x1] %vm2501, %v2500
        %s2503 = sand.u32 %s190, 1
        %s2504 = scalar_lea.sflag [#allocation4], %s2503
        %s2505 = sand.u32 %s190, 1
        %s2506 = smul.addr %s2505, 64
        %s2507 = scalar_lea.vmem [#allocation5], %s2506
        %p2508 = scmp.lt.s32.totalorder %s30, 1
        %s2509 = scalar_select %p2508, %s30, 1
        %s2510 = smul.addr %s2509, 32
        %s2511 = smul.addr %s2510, 8
        %s2512 = scalar_lea.vmem %s8, %s2511
        %p2513 = scmp.lt.s32.totalorder %s30, 1
        %s2514 = scalar_select %p2513, %s30, 1
        %s2515 = smul.addr %s2514, 32
        %s2516 = smul.addr %s2515, 8
        %s2517 = scalar_lea.vmem %s9, %s2516
        %s2518 = sand.u32 %s30, 1
        %s2519 = scalar_lea.sflag [#allocation7], %s2518
        %s2520 = sand.u32 %s268, 1
        %s2521 = smul.addr %s2520, 512
        %s2522 = scalar_lea.vmem [#allocation6], %s2521
        %s2523 = sand.u32 %s30, 1
        %s2524 = scalar_lea.sflag [#allocation7], %s2523
        %s2525 = sand.u32 %s294, 1
        %s2526 = scalar_lea.vmem [#allocation8], %s2525
        // Predicated region
        $region53: #{tpu_custom_call.1} parent=47 // pred_check
          %p2527 = pneg %p200
        $region54: #{tpu_custom_call.1} parent=47 // pred_check_branch
          %2529 = sbr.rel (%p2527) target = $region56
        $region55: #{tpu_custom_call.1} parent=47 // pred_region
          %s2531 = ssub.s32 1024, 1024
          %2532 = vsyncadd %s2504, %s2531
          %s2533 = smul.addr %s30, 8
          %s2534 = smul.addr %s2533, 128
          %s2535 = scalar_lea.hbm %s7, %s2534
          %s2536 = sshll.u32 %s2507, 4
          %s2537 = int_to_ptr.vmem [resolvable:$true] %s2536
          %2542 = dma.vmem_to_hbm [thread:$0]  %s2537, 1024, %s2535, %s2504, 128, 128, 8
        $region56: #{tpu_custom_call.1} parent=47 // pred_fallthru
          _
        // Predicated region
        $region57: #{tpu_custom_call.1} parent=47 // pred_check
          %p2543 = pneg %p226
        $region58: #{tpu_custom_call.1} parent=47 // pred_check_branch
          %2545 = sbr.rel (%p2543) target = $region60
        $region59: #{tpu_custom_call.1} parent=47 // pred_region
          _
        $region60: #{tpu_custom_call.1} parent=47 // pred_fallthru
          _
        // Predicated region
        $region61: #{tpu_custom_call.1} parent=47 // pred_check
          %p2546 = pneg %p252
        $region62: #{tpu_custom_call.1} parent=47 // pred_check_branch
          %2548 = sbr.rel (%p2546) target = $region64
        $region63: #{tpu_custom_call.1} parent=47 // pred_region
          _
        $region64: #{tpu_custom_call.1} parent=47 // pred_fallthru
          _
        // Predicated region
        $region65: #{tpu_custom_call.1} parent=47 // pred_check
          %p2549 = pneg %p278
        $region66: #{tpu_custom_call.1} parent=47 // pred_check_branch
          %2551 = sbr.rel (%p2549) target = $region68
        $region67: #{tpu_custom_call.1} parent=47 // pred_region
          %s2553 = ssub.s32 8192, 8192
          %2554 = vsyncadd %s2519, %s2553
          %s2555 = smul.addr %s30, 64
          %s2556 = smul.addr %s2555, 128
          %s2557 = scalar_lea.hbm %s10, %s2556
          %s2558 = sshll.u32 %s2522, 4
          %s2559 = int_to_ptr.vmem [resolvable:$true] %s2558
          %2564 = dma.vmem_to_hbm [thread:$0]  %s2559, 8192, %s2557, %s2519, 256, 256, 16
        $region68: #{tpu_custom_call.1} parent=47 // pred_fallthru
          _
        // Predicated region
        $region69: #{tpu_custom_call.1} parent=47 // pred_check
          %p2565 = pneg %p304
        $region70: #{tpu_custom_call.1} parent=47 // pred_check_branch
          %2567 = sbr.rel (%p2565) target = $region72
        $region71: #{tpu_custom_call.1} parent=47 // pred_region
          %s2569 = ssub.s32 16, 16
          %2570 = vsyncadd %s2524, %s2569
          %s2571 = smul.addr %s30, 16
          %s2572 = scalar_lea.hbm %s11, %s2571
          %s2574 = sshll.u32 %s2526, 4
          %s2575 = int_to_ptr.vmem [resolvable:$true] %s2574
          %2577 = dma.vmem_to_hbm [thread:$0]  %s2575, 16, %s2572, %s2524
        $region72: #{tpu_custom_call.1} parent=47 // pred_fallthru
          _
      $region48: #{tpu_custom_call.1} parent=5 // pred_fallthru
        _
      %p2578 = scmp.le.s32.totalorder 2, %s25
      // Predicated region
      $region73: #{tpu_custom_call.1} parent=5 // pred_check
        %p2579 = pneg %p2578
      $region74: #{tpu_custom_call.1} parent=5 // pred_check_branch
        %2581 = sbr.rel (%p2579) target = $region76
      $region75: #{tpu_custom_call.1} parent=5 // pred_region
        %s2582 = ssub.s32 %s25, 2
        // Predicated region
        $region77: #{tpu_custom_call.1} parent=75 // pred_check
          %p2583 = pneg %p206
        $region78: #{tpu_custom_call.1} parent=75 // pred_check_branch
          %2585 = sbr.rel (%p2583) target = $region80
        $region79: #{tpu_custom_call.1} parent=75 // pred_region
          %s2586 = sand.u32 %s191, 1
          %s2587 = scalar_lea.sflag [#allocation4], %s2586
          %s2588 = sand.u32 %s191, 1
          %s2589 = smul.addr %s2588, 64
          %s2590 = scalar_lea.vmem [#allocation5], %s2589
          %2591 = dma.done %s2587, 1024
        $region80: #{tpu_custom_call.1} parent=75 // pred_fallthru
          _
        // Predicated region
        $region81: #{tpu_custom_call.1} parent=75 // pred_check
          %p2592 = pneg %p232
        $region82: #{tpu_custom_call.1} parent=75 // pred_check_branch
          %2594 = sbr.rel (%p2592) target = $region84
        $region83: #{tpu_custom_call.1} parent=75 // pred_region
          %p2595 = scmp.lt.s32.totalorder %s31, 1
          %s2596 = scalar_select %p2595, %s31, 1
          %s2597 = smul.addr %s2596, 32
          %s2598 = smul.addr %s2597, 8
          %s2599 = scalar_lea.vmem %s8, %s2598
        $region84: #{tpu_custom_call.1} parent=75 // pred_fallthru
          _
        // Predicated region
        $region85: #{tpu_custom_call.1} parent=75 // pred_check
          %p2600 = pneg %p258
        $region86: #{tpu_custom_call.1} parent=75 // pred_check_branch
          %2602 = sbr.rel (%p2600) target = $region88
        $region87: #{tpu_custom_call.1} parent=75 // pred_region
          %p2603 = scmp.lt.s32.totalorder %s31, 1
          %s2604 = scalar_select %p2603, %s31, 1
          %s2605 = smul.addr %s2604, 32
          %s2606 = smul.addr %s2605, 8
          %s2607 = scalar_lea.vmem %s9, %s2606
        $region88: #{tpu_custom_call.1} parent=75 // pred_fallthru
          _
        // Predicated region
        $region89: #{tpu_custom_call.1} parent=75 // pred_check
          %p2608 = pneg %p284
        $region90: #{tpu_custom_call.1} parent=75 // pred_check_branch
          %2610 = sbr.rel (%p2608) target = $region92
        $region91: #{tpu_custom_call.1} parent=75 // pred_region
          %s2611 = sand.u32 %s31, 1
          %s2612 = scalar_lea.sflag [#allocation7], %s2611
          %s2613 = sand.u32 %s269, 1
          %s2614 = smul.addr %s2613, 512
          %s2615 = scalar_lea.vmem [#allocation6], %s2614
          %2616 = dma.done %s2612, 8192
        $region92: #{tpu_custom_call.1} parent=75 // pred_fallthru
          _
        // Predicated region
        $region93: #{tpu_custom_call.1} parent=75 // pred_check
          %p2617 = pneg %p310
        $region94: #{tpu_custom_call.1} parent=75 // pred_check_branch
          %2619 = sbr.rel (%p2617) target = $region96
        $region95: #{tpu_custom_call.1} parent=75 // pred_region
          %s2620 = sand.u32 %s31, 1
          %s2621 = scalar_lea.sflag [#allocation7], %s2620
          %s2622 = sand.u32 %s295, 1
          %s2623 = scalar_lea.vmem [#allocation8], %s2622
          %2624 = dma.done %s2621, 16
        $region96: #{tpu_custom_call.1} parent=75 // pred_fallthru
          _
      $region76: #{tpu_custom_call.1} parent=5 // pred_fallthru
        _
    $region6: #{tpu_custom_call.1} parent=1 // loop_footer
      %s29 = sadd.s32 1, %s25
    $region7: #{tpu_custom_call.1} parent=1 // loop_footer_branch
      %24 = sbr.rel target = $region3
    $region8: #{tpu_custom_call.1} parent=1 // loop_exit
      _
    %2625 = vsyncpa [#allocation3], 1
    %s2626 = scalar_lea.sflag [#allocation3], 1
    %2627 = vsyncpa %s2626, 1
    %2628 = vsyncpa [#allocation4], 1
    %s2629 = scalar_lea.sflag [#allocation4], 1
    %2630 = vsyncpa %s2629, 1
    %2631 = vsyncpa [#allocation7], 1
    %s2632 = scalar_lea.sflag [#allocation7], 1
    %2633 = vsyncpa %s2632, 1

</llo_original>
